<compile_context>
chip_gen: v7x
topology: tpu7x:2x2x1
jax: 0.10.0
libtpu: 0.0.40
codegen_flags: <defaults>
</compile_context>

<pallas_src>
import math
import functools

import jax
import jax.numpy as jnp
from jax.experimental import pallas as pl
from jax.experimental.pallas import tpu as pltpu

BLOCK_SIZE = 4   # causal-mask size from the PyTorch module
LN_EPS = 1e-5    # nn.LayerNorm default


def gpt_block_kernel(x_ref,
                     wqkv_ref, w1_ref, w2_ref, g_ref, aff_ref, b1_ref,
                     o_ref,
                     *, seq_len, embed, matmul_dtype, approx_recip):
    T, C = seq_len, embed
    TC = T * C
    mm = matmul_dtype

    # (bt, T*C) lane-dense slab; all VPU math in f32.
    x2 = x_ref[...].astype(jnp.float32)

    G = g_ref[...]                    # (TC, TC) f32, 1/C inside diag CxC blocks
    aff = aff_ref[...]                # (5, TC) f32: [g1, be1, g2, be2, b2]
    g1, be1 = aff[0:1, :], aff[1:2, :]
    g2, be2 = aff[2:3, :], aff[3:4, :]
    b2 = aff[4:5, :]
    b1 = b1_ref[...]                  # (1, 4*TC) f32

    def group_ln(h, gamma, beta):
        # Per-timestep (group-of-C-lanes) LayerNorm on the whole slab.
        # Group mean / variance via tiny f32 MXU matmuls against G; results
        # come out already broadcast across each group's lanes.
        mu = jnp.dot(h, G, preferred_element_type=jnp.float32)
        c = h - mu
        var = jnp.dot(c * c, G, preferred_element_type=jnp.float32)
        return c * jax.lax.rsqrt(var + LN_EPS) * gamma + beta

    # ---- ln1 + fused block-diagonal Q/K/V projection: one slab-wide GEMM ----
    h1 = group_ln(x2, g1, be1)                                   # (bt, TC)
    qkv = jnp.dot(h1.astype(mm), wqkv_ref[...],
                  preferred_element_type=jnp.float32)            # (bt, 3*TC)
    # Column layout: [ q_0..q_{T-1} | k_0..k_{T-1} | v_0..v_{T-1} ],
    # 1/sqrt(C) already folded into the Q columns.

    k_list = [qkv[:, TC + s * C: TC + (s + 1) * C] for s in range(T)]
    v_list = [qkv[:, 2 * TC + s * C: 2 * TC + (s + 1) * C] for s in range(T)]

    # ---- causal attention (VPU only; mask via static loop bounds s <= t) ----
    # TODO(synk): if the bundle profile shows XLU pressure, replace the
    # per-(t,s) lane reductions with a group-sum matmul against G.
    sa_parts = []
    for t in range(T):
        q_t = qkv[:, t * C:(t + 1) * C]                          # (bt, C)
        scores = [jnp.sum(q_t * k_list[s], axis=-1, keepdims=True)
                  for s in range(t + 1)]                         # (bt, 1) each
        m = scores[0]
        for s in range(1, t + 1):
            m = jnp.maximum(m, scores[s])
        exps = [jnp.exp(sc - m) for sc in scores]
        denom = exps[0]
        for s in range(1, t + 1):
            denom = denom + exps[s]
        if approx_recip:
            inv = pl.reciprocal(denom, approx=True)              # EUP slot
        else:
            inv = 1.0 / denom
        # dropout(p=0.1) on attention weights: identity in eval mode.
        sa_t = (exps[0] * inv) * v_list[0]
        for s in range(1, t + 1):
            sa_t = sa_t + (exps[s] * inv) * v_list[s]            # (bt, C)
        sa_parts.append(sa_t)

    x_res = x2 + jnp.concatenate(sa_parts, axis=-1)              # residual 1, (bt, TC)

    # ---- ln2 + block-diagonal MLP: 2 slab-wide GEMMs ----
    h2 = group_ln(x_res, g2, be2)
    ff = jnp.dot(h2.astype(mm), w1_ref[...],
                 preferred_element_type=jnp.float32) + b1        # (bt, 4*TC)
    ff = jnp.maximum(ff, 0.0)
    ff = jnp.dot(ff.astype(mm), w2_ref[...],
                 preferred_element_type=jnp.float32) + b2        # (bt, TC)

    # Single lane-dense store of the whole (bt, TC) output slab.
    o_ref[...] = (x_res + ff).astype(o_ref.dtype)                # residual 2


def gpt_block(x, params, *, batch_tile=1024, matmul_dtype=jnp.bfloat16):
    """x: (B, T, C) float32; params: dict of weights (see init_params).

    batch_tile: rows per grid step.  1024 is a safe default across v5e/v6e/v7x
    (v6e/v5e with 128 MiB physical VMEM can use 2048-4096).
    """
    B, T, C = x.shape
    assert T <= BLOCK_SIZE
    TC = T * C
    f32 = jnp.float32

    # --- one-time weight prep in the wrapper (outside the hot loop) ---
    eyeT = jnp.eye(T, dtype=f32)
    # nn.Linear weight is (out, in); pre-transpose to (in, out), fold the
    # 1/sqrt(C) softmax scale into Q in f32, then build block-diagonal fused
    # weights so the per-timestep projections become slab-wide GEMMs.
    q_bd = jnp.kron(eyeT, params["wq"].T.astype(f32) / math.sqrt(C))
    k_bd = jnp.kron(eyeT, params["wk"].T.astype(f32))
    v_bd = jnp.kron(eyeT, params["wv"].T.astype(f32))
    wqkv_bd = jnp.concatenate([q_bd, k_bd, v_bd], axis=1).astype(matmul_dtype)  # (TC, 3TC)

    w1_bd = jnp.kron(eyeT, params["w1"].T.astype(f32)).astype(matmul_dtype)     # (TC, 4TC)
    w2_bd = jnp.kron(eyeT, params["w2"].T.astype(f32)).astype(matmul_dtype)     # (4TC, TC)
    b1_bd = jnp.tile(params["b1"].astype(f32), (1, T))                          # (1, 4TC)

    # Block-structured group-averaging matrix for the per-group LayerNorm.
    G = jnp.kron(eyeT, jnp.full((C, C), 1.0 / C, dtype=f32))                    # (TC, TC)

    # Pack the small per-lane params into one array: [g1, be1, g2, be2, b2].
    aff = jnp.concatenate([
        jnp.tile(params["g1"].astype(f32), (1, T)),
        jnp.tile(params["be1"].astype(f32), (1, T)),
        jnp.tile(params["g2"].astype(f32), (1, T)),
        jnp.tile(params["be2"].astype(f32), (1, T)),
        jnp.tile(params["b2"].astype(f32), (1, T)),
    ], axis=0)                                                                   # (5, TC)

    # Lane-dense layout: (B, T*C).  Pure collapse reshape -> free.
    x2 = x.reshape(B, TC)

    # Tile selection: big tiles amortise per-step overhead; if the whole batch
    # fits in one tile but is reasonably large, split into 2 tiles so the
    # "parallel" grid axis can feed both TensorCores on v7x.
    if 16 <= B <= batch_tile:
        bt = ((pl.cdiv(B, 2) + 7) // 8) * 8
    else:
        bt = min(batch_tile, B)
    n_steps = pl.cdiv(B, bt)
    b_pad = n_steps * bt
    if b_pad != B:
        # Zero padding is safe: padded rows produce finite garbage (LN with
        # var=0 hits rsqrt(eps)) and are sliced off below.
        x2 = jnp.pad(x2, ((0, b_pad - B), (0, 0)))

    def full_spec(arr):
        nd = arr.ndim
        return pl.BlockSpec(arr.shape, lambda b: (0,) * nd)

    kernel = functools.partial(
        gpt_block_kernel, seq_len=T, embed=C, matmul_dtype=matmul_dtype,
        approx_recip=(matmul_dtype != jnp.float32))

    out2 = pl.pallas_call(
        kernel,
        out_shape=jax.ShapeDtypeStruct((b_pad, TC), x.dtype),
        grid_spec=pltpu.PrefetchScalarGridSpec(
            num_scalar_prefetch=0,
            grid=(n_steps,),
            in_specs=[
                pl.BlockSpec((bt, TC), lambda b: (b, 0)),   # x slab
                full_spec(wqkv_bd), full_spec(w1_bd), full_spec(w2_bd),
                full_spec(G), full_spec(aff), full_spec(b1_bd),
            ],
            out_specs=pl.BlockSpec((bt, TC), lambda b: (b, 0)),
        ),
        compiler_params=pltpu.CompilerParams(
            dimension_semantics=("parallel",),
            # <= ~48 MiB keeps headroom on v7x's 64 MiB VMEM; v5e/v6e could go
            # higher together with a larger batch_tile.
            vmem_limit_bytes=48 * 1024 * 1024),
    )(x2, wqkv_bd, w1_bd, w2_bd, G, aff, b1_bd)

    return out2[:B].reshape(B, T, C)


def init_params(key, embed_size):
    C = embed_size
    ks = jax.random.split(key, 5)
    scale = 1.0 / math.sqrt(C)
    return {
        # attention projections (nn.Linear(embed, head, bias=False): weight (out, in))
        "wk": jax.random.normal(ks[0], (C, C), jnp.float32) * scale,
        "wq": jax.random.normal(ks[1], (C, C), jnp.float32) * scale,
        "wv": jax.random.normal(ks[2], (C, C), jnp.float32) * scale,
        # MLP
        "w1": jax.random.normal(ks[3], (4 * C, C), jnp.float32) * scale,
        "b1": jnp.zeros((1, 4 * C), jnp.float32),
        "w2": jax.random.normal(ks[4], (C, 4 * C), jnp.float32) * (1.0 / math.sqrt(4 * C)),
        "b2": jnp.zeros((1, C), jnp.float32),
        # LayerNorm affine params (PyTorch default init: weight=1, bias=0)
        "g1": jnp.ones((1, C), jnp.float32),
        "be1": jnp.zeros((1, C), jnp.float32),
        "g2": jnp.ones((1, C), jnp.float32),
        "be2": jnp.zeros((1, C), jnp.float32),
    }


def gpt_block_ref(x, p):
    """Pure-JAX reference of the PyTorch forward (eval mode)."""
    B, T, C = x.shape

    def ln(h, g, b):
        mu = h.mean(-1, keepdims=True)
        var = ((h - mu) ** 2).mean(-1, keepdims=True)
        return (h - mu) / jnp.sqrt(var + LN_EPS) * g + b

    h = ln(x, p["g1"], p["be1"])
    k = h @ p["wk"].T
    q = h @ p["wq"].T
    v = h @ p["wv"].T
    wei = q @ jnp.swapaxes(k, -2, -1) / math.sqrt(C)
    tril = jnp.tril(jnp.ones((T, T)))
    wei = jnp.where(tril == 0, -jnp.inf, wei)
    wei = jax.nn.softmax(wei, axis=-1)
    x = x + wei @ v
    h2 = ln(x, p["g2"], p["be2"])
    ff = jnp.maximum(h2 @ p["w1"].T + p["b1"], 0.0) @ p["w2"].T + p["b2"]
    return x + ff


if __name__ == "__main__":
    key = jax.random.PRNGKey(0)
    kx, kp = jax.random.split(key)

    B, T, C = 2, 4, 32   # T == block_size, embed_size = 32
    x = jax.random.normal(kx, (B, T, C), jnp.float32)
    params = init_params(kp, C)

    ref = gpt_block_ref(x, params)

    # f32 GEMM path: tight correctness check (exact softmax reciprocal).
    out_f32 = jax.block_until_ready(gpt_block(x, params, matmul_dtype=jnp.float32))
    assert out_f32.shape == (B, T, C)
    assert jnp.allclose(out_f32, ref, atol=1e-3, rtol=1e-3), "f32 mismatch vs reference"

    # Default bf16 GEMM path (MXU fast path): looser tolerance.
    out_bf16 = jax.block_until_ready(gpt_block(x, params))
    assert out_bf16.shape == (B, T, C)
    assert jnp.allclose(out_bf16, ref, atol=5e-2, rtol=5e-2), "bf16 mismatch vs reference"

    print("KERNEL_OK")
</pallas_src>

<mosaic_0001>
module attributes {stable_mosaic.version = 11 : i64} {
  func.func @gpt_block_kernel(%arg0: i32, %arg1: memref<2x128xf32, #tpu.memory_space<vmem>>, %arg2: memref<128x384xf32, #tpu.memory_space<vmem>>, %arg3: memref<128x512xf32, #tpu.memory_space<vmem>>, %arg4: memref<512x128xf32, #tpu.memory_space<vmem>>, %arg5: memref<128x128xf32, #tpu.memory_space<vmem>>, %arg6: memref<5x128xf32, #tpu.memory_space<vmem>>, %arg7: memref<1x512xf32, #tpu.memory_space<vmem>>, %arg8: memref<2x128xf32, #tpu.memory_space<vmem>>) attributes {dimension_semantics = [#tpu.dimension_semantics<parallel>], iteration_bounds = array<i64: 1>, scalar_prefetch = 0 : i64, scratch_operands = 0 : i64, tpu.core_type = #tpu.core_type<tc>, window_params = [{transform_indices = @transform_0, window_bounds = array<i64: 2, 128>}, {pipeline_mode = #tpu.pipeline_mode<synchronous>, transform_indices = @transform_1, window_bounds = array<i64: 128, 384>}, {pipeline_mode = #tpu.pipeline_mode<synchronous>, transform_indices = @transform_2, window_bounds = array<i64: 128, 512>}, {pipeline_mode = #tpu.pipeline_mode<synchronous>, transform_indices = @transform_3, window_bounds = array<i64: 512, 128>}, {pipeline_mode = #tpu.pipeline_mode<synchronous>, transform_indices = @transform_4, window_bounds = array<i64: 128, 128>}, {pipeline_mode = #tpu.pipeline_mode<synchronous>, transform_indices = @transform_5, window_bounds = array<i64: 5, 128>}, {pipeline_mode = #tpu.pipeline_mode<synchronous>, transform_indices = @transform_6, window_bounds = array<i64: 1, 512>}, {transform_indices = @transform_7, window_bounds = array<i64: 2, 128>}]} {
    %c0 = arith.constant 0 : index
    %c0_0 = arith.constant 0 : index
    %0 = vector.load %arg1[%c0, %c0_0] : memref<2x128xf32, #tpu.memory_space<vmem>>, vector<2x128xf32>
    %c0_1 = arith.constant 0 : index
    %c0_2 = arith.constant 0 : index
    %1 = vector.load %arg5[%c0_1, %c0_2] : memref<128x128xf32, #tpu.memory_space<vmem>>, vector<128x128xf32>
    %c0_3 = arith.constant 0 : index
    %c0_4 = arith.constant 0 : index
    %2 = vector.load %arg6[%c0_3, %c0_4] : memref<5x128xf32, #tpu.memory_space<vmem>>, vector<5x128xf32>
    %3 = vector.extract_strided_slice %2 {offsets = [0, 0], sizes = [1, 128], strides = [1, 1]} : vector<5x128xf32> to vector<1x128xf32>
    %4 = vector.extract_strided_slice %2 {offsets = [1, 0], sizes = [1, 128], strides = [1, 1]} : vector<5x128xf32> to vector<1x128xf32>
    %5 = vector.extract_strided_slice %2 {offsets = [2, 0], sizes = [1, 128], strides = [1, 1]} : vector<5x128xf32> to vector<1x128xf32>
    %6 = vector.extract_strided_slice %2 {offsets = [3, 0], sizes = [1, 128], strides = [1, 1]} : vector<5x128xf32> to vector<1x128xf32>
    %7 = vector.extract_strided_slice %2 {offsets = [4, 0], sizes = [1, 128], strides = [1, 1]} : vector<5x128xf32> to vector<1x128xf32>
    %c0_5 = arith.constant 0 : index
    %c0_6 = arith.constant 0 : index
    %8 = vector.load %arg7[%c0_5, %c0_6] : memref<1x512xf32, #tpu.memory_space<vmem>>, vector<1x512xf32>
    %cst = arith.constant dense<0.000000e+00> : vector<2x128xf32>
    %9 = tpu.matmul %0, %1, %cst {dimension_numbers = #tpu.dot_dimension_numbers<[1], [0], [0], [1], [0, 0, 1, 1], [], []>} : vector<2x128xf32>, vector<128x128xf32>, vector<2x128xf32> -> vector<2x128xf32>
    %10 = arith.subf %0, %9 : vector<2x128xf32>
    %11 = arith.mulf %10, %10 : vector<2x128xf32>
    %cst_7 = arith.constant dense<0.000000e+00> : vector<2x128xf32>
    %12 = tpu.matmul %11, %1, %cst_7 {dimension_numbers = #tpu.dot_dimension_numbers<[1], [0], [0], [1], [0, 0, 1, 1], [], []>} : vector<2x128xf32>, vector<128x128xf32>, vector<2x128xf32> -> vector<2x128xf32>
    %cst_8 = arith.constant 9.99999974E-6 : f32
    %13 = vector.broadcast %cst_8 : f32 to vector<2x128xf32>
    %14 = arith.addf %12, %13 : vector<2x128xf32>
    %15 = math.rsqrt %14 : vector<2x128xf32>
    %16 = arith.mulf %10, %15 : vector<2x128xf32>
    %17 = vector.broadcast %3 : vector<1x128xf32> to vector<2x128xf32>
    %18 = arith.mulf %16, %17 : vector<2x128xf32>
    %19 = vector.broadcast %4 : vector<1x128xf32> to vector<2x128xf32>
    %20 = arith.addf %18, %19 : vector<2x128xf32>
    %c0_9 = arith.constant 0 : index
    %c0_10 = arith.constant 0 : index
    %21 = vector.load %arg2[%c0_9, %c0_10] : memref<128x384xf32, #tpu.memory_space<vmem>>, vector<128x384xf32>
    %cst_11 = arith.constant dense<0.000000e+00> : vector<2x384xf32>
    %22 = tpu.matmul %20, %21, %cst_11 {dimension_numbers = #tpu.dot_dimension_numbers<[1], [0], [0], [1], [0, 0, 1, 1], [], []>} : vector<2x128xf32>, vector<128x384xf32>, vector<2x384xf32> -> vector<2x384xf32>
    %23 = vector.extract_strided_slice %22 {offsets = [0, 128], sizes = [2, 32], strides = [1, 1]} : vector<2x384xf32> to vector<2x32xf32>
    %24 = vector.extract_strided_slice %22 {offsets = [0, 160], sizes = [2, 32], strides = [1, 1]} : vector<2x384xf32> to vector<2x32xf32>
    %25 = vector.extract_strided_slice %22 {offsets = [0, 192], sizes = [2, 32], strides = [1, 1]} : vector<2x384xf32> to vector<2x32xf32>
    %26 = vector.extract_strided_slice %22 {offsets = [0, 224], sizes = [2, 32], strides = [1, 1]} : vector<2x384xf32> to vector<2x32xf32>
    %27 = vector.extract_strided_slice %22 {offsets = [0, 256], sizes = [2, 32], strides = [1, 1]} : vector<2x384xf32> to vector<2x32xf32>
    %28 = vector.extract_strided_slice %22 {offsets = [0, 288], sizes = [2, 32], strides = [1, 1]} : vector<2x384xf32> to vector<2x32xf32>
    %29 = vector.extract_strided_slice %22 {offsets = [0, 320], sizes = [2, 32], strides = [1, 1]} : vector<2x384xf32> to vector<2x32xf32>
    %30 = vector.extract_strided_slice %22 {offsets = [0, 352], sizes = [2, 32], strides = [1, 1]} : vector<2x384xf32> to vector<2x32xf32>
    %31 = vector.extract_strided_slice %22 {offsets = [0, 0], sizes = [2, 32], strides = [1, 1]} : vector<2x384xf32> to vector<2x32xf32>
    %32 = arith.mulf %31, %23 : vector<2x32xf32>
    %cst_12 = arith.constant dense<0.000000e+00> : vector<2xf32>
    %33 = vector.multi_reduction <add>, %32, %cst_12 [1] : vector<2x32xf32> to vector<2xf32>
    %34 = vector.shape_cast %33 : vector<2xf32> to vector<2x1xf32>
    %35 = arith.subf %34, %34 : vector<2x1xf32>
    %36 = math.exp %35 : vector<2x1xf32>
    %cst_13 = arith.constant 1.000000e+00 : f32
    %37 = vector.broadcast %cst_13 : f32 to vector<2x1xf32>
    %38 = arith.divf %37, %36 : vector<2x1xf32>
    %39 = arith.mulf %36, %38 : vector<2x1xf32>
    %40 = vector.broadcast %39 : vector<2x1xf32> to vector<2x32xf32>
    %41 = arith.mulf %40, %27 : vector<2x32xf32>
    %42 = vector.extract_strided_slice %22 {offsets = [0, 32], sizes = [2, 32], strides = [1, 1]} : vector<2x384xf32> to vector<2x32xf32>
    %43 = arith.mulf %42, %23 : vector<2x32xf32>
    %cst_14 = arith.constant dense<0.000000e+00> : vector<2xf32>
    %44 = vector.multi_reduction <add>, %43, %cst_14 [1] : vector<2x32xf32> to vector<2xf32>
    %45 = vector.shape_cast %44 : vector<2xf32> to vector<2x1xf32>
    %46 = arith.mulf %42, %24 : vector<2x32xf32>
    %cst_15 = arith.constant dense<0.000000e+00> : vector<2xf32>
    %47 = vector.multi_reduction <add>, %46, %cst_15 [1] : vector<2x32xf32> to vector<2xf32>
    %48 = vector.shape_cast %47 : vector<2xf32> to vector<2x1xf32>
    %49 = arith.maximumf %45, %48 : vector<2x1xf32>
    %50 = arith.subf %45, %49 : vector<2x1xf32>
    %51 = math.exp %50 : vector<2x1xf32>
    %52 = arith.subf %48, %49 : vector<2x1xf32>
    %53 = math.exp %52 : vector<2x1xf32>
    %54 = arith.addf %51, %53 : vector<2x1xf32>
    %cst_16 = arith.constant 1.000000e+00 : f32
    %55 = vector.broadcast %cst_16 : f32 to vector<2x1xf32>
    %56 = arith.divf %55, %54 : vector<2x1xf32>
    %57 = arith.mulf %51, %56 : vector<2x1xf32>
    %58 = vector.broadcast %57 : vector<2x1xf32> to vector<2x32xf32>
    %59 = arith.mulf %58, %27 : vector<2x32xf32>
    %60 = arith.mulf %53, %56 : vector<2x1xf32>
    %61 = vector.broadcast %60 : vector<2x1xf32> to vector<2x32xf32>
    %62 = arith.mulf %61, %28 : vector<2x32xf32>
    %63 = arith.addf %59, %62 : vector<2x32xf32>
    %64 = vector.extract_strided_slice %22 {offsets = [0, 64], sizes = [2, 32], strides = [1, 1]} : vector<2x384xf32> to vector<2x32xf32>
    %65 = arith.mulf %64, %23 : vector<2x32xf32>
    %cst_17 = arith.constant dense<0.000000e+00> : vector<2xf32>
    %66 = vector.multi_reduction <add>, %65, %cst_17 [1] : vector<2x32xf32> to vector<2xf32>
    %67 = vector.shape_cast %66 : vector<2xf32> to vector<2x1xf32>
    %68 = arith.mulf %64, %24 : vector<2x32xf32>
    %cst_18 = arith.constant dense<0.000000e+00> : vector<2xf32>
    %69 = vector.multi_reduction <add>, %68, %cst_18 [1] : vector<2x32xf32> to vector<2xf32>
    %70 = vector.shape_cast %69 : vector<2xf32> to vector<2x1xf32>
    %71 = arith.mulf %64, %25 : vector<2x32xf32>
    %cst_19 = arith.constant dense<0.000000e+00> : vector<2xf32>
    %72 = vector.multi_reduction <add>, %71, %cst_19 [1] : vector<2x32xf32> to vector<2xf32>
    %73 = vector.shape_cast %72 : vector<2xf32> to vector<2x1xf32>
    %74 = arith.maximumf %67, %70 : vector<2x1xf32>
    %75 = arith.maximumf %74, %73 : vector<2x1xf32>
    %76 = arith.subf %67, %75 : vector<2x1xf32>
    %77 = math.exp %76 : vector<2x1xf32>
    %78 = arith.subf %70, %75 : vector<2x1xf32>
    %79 = math.exp %78 : vector<2x1xf32>
    %80 = arith.subf %73, %75 : vector<2x1xf32>
    %81 = math.exp %80 : vector<2x1xf32>
    %82 = arith.addf %77, %79 : vector<2x1xf32>
    %83 = arith.addf %82, %81 : vector<2x1xf32>
    %cst_20 = arith.constant 1.000000e+00 : f32
    %84 = vector.broadcast %cst_20 : f32 to vector<2x1xf32>
    %85 = arith.divf %84, %83 : vector<2x1xf32>
    %86 = arith.mulf %77, %85 : vector<2x1xf32>
    %87 = vector.broadcast %86 : vector<2x1xf32> to vector<2x32xf32>
    %88 = arith.mulf %87, %27 : vector<2x32xf32>
    %89 = arith.mulf %79, %85 : vector<2x1xf32>
    %90 = vector.broadcast %89 : vector<2x1xf32> to vector<2x32xf32>
    %91 = arith.mulf %90, %28 : vector<2x32xf32>
    %92 = arith.addf %88, %91 : vector<2x32xf32>
    %93 = arith.mulf %81, %85 : vector<2x1xf32>
    %94 = vector.broadcast %93 : vector<2x1xf32> to vector<2x32xf32>
    %95 = arith.mulf %94, %29 : vector<2x32xf32>
    %96 = arith.addf %92, %95 : vector<2x32xf32>
    %97 = vector.extract_strided_slice %22 {offsets = [0, 96], sizes = [2, 32], strides = [1, 1]} : vector<2x384xf32> to vector<2x32xf32>
    %98 = arith.mulf %97, %23 : vector<2x32xf32>
    %cst_21 = arith.constant dense<0.000000e+00> : vector<2xf32>
    %99 = vector.multi_reduction <add>, %98, %cst_21 [1] : vector<2x32xf32> to vector<2xf32>
    %100 = vector.shape_cast %99 : vector<2xf32> to vector<2x1xf32>
    %101 = arith.mulf %97, %24 : vector<2x32xf32>
    %cst_22 = arith.constant dense<0.000000e+00> : vector<2xf32>
    %102 = vector.multi_reduction <add>, %101, %cst_22 [1] : vector<2x32xf32> to vector<2xf32>
    %103 = vector.shape_cast %102 : vector<2xf32> to vector<2x1xf32>
    %104 = arith.mulf %97, %25 : vector<2x32xf32>
    %cst_23 = arith.constant dense<0.000000e+00> : vector<2xf32>
    %105 = vector.multi_reduction <add>, %104, %cst_23 [1] : vector<2x32xf32> to vector<2xf32>
    %106 = vector.shape_cast %105 : vector<2xf32> to vector<2x1xf32>
    %107 = arith.mulf %97, %26 : vector<2x32xf32>
    %cst_24 = arith.constant dense<0.000000e+00> : vector<2xf32>
    %108 = vector.multi_reduction <add>, %107, %cst_24 [1] : vector<2x32xf32> to vector<2xf32>
    %109 = vector.shape_cast %108 : vector<2xf32> to vector<2x1xf32>
    %110 = arith.maximumf %100, %103 : vector<2x1xf32>
    %111 = arith.maximumf %110, %106 : vector<2x1xf32>
    %112 = arith.maximumf %111, %109 : vector<2x1xf32>
    %113 = arith.subf %100, %112 : vector<2x1xf32>
    %114 = math.exp %113 : vector<2x1xf32>
    %115 = arith.subf %103, %112 : vector<2x1xf32>
    %116 = math.exp %115 : vector<2x1xf32>
    %117 = arith.subf %106, %112 : vector<2x1xf32>
    %118 = math.exp %117 : vector<2x1xf32>
    %119 = arith.subf %109, %112 : vector<2x1xf32>
    %120 = math.exp %119 : vector<2x1xf32>
    %121 = arith.addf %114, %116 : vector<2x1xf32>
    %122 = arith.addf %121, %118 : vector<2x1xf32>
    %123 = arith.addf %122, %120 : vector<2x1xf32>
    %cst_25 = arith.constant 1.000000e+00 : f32
    %124 = vector.broadcast %cst_25 : f32 to vector<2x1xf32>
    %125 = arith.divf %124, %123 : vector<2x1xf32>
    %126 = arith.mulf %114, %125 : vector<2x1xf32>
    %127 = vector.broadcast %126 : vector<2x1xf32> to vector<2x32xf32>
    %128 = arith.mulf %127, %27 : vector<2x32xf32>
    %129 = arith.mulf %116, %125 : vector<2x1xf32>
    %130 = vector.broadcast %129 : vector<2x1xf32> to vector<2x32xf32>
    %131 = arith.mulf %130, %28 : vector<2x32xf32>
    %132 = arith.addf %128, %131 : vector<2x32xf32>
    %133 = arith.mulf %118, %125 : vector<2x1xf32>
    %134 = vector.broadcast %133 : vector<2x1xf32> to vector<2x32xf32>
    %135 = arith.mulf %134, %29 : vector<2x32xf32>
    %136 = arith.addf %132, %135 : vector<2x32xf32>
    %137 = arith.mulf %120, %125 : vector<2x1xf32>
    %138 = vector.broadcast %137 : vector<2x1xf32> to vector<2x32xf32>
    %139 = arith.mulf %138, %30 : vector<2x32xf32>
    %140 = arith.addf %136, %139 : vector<2x32xf32>
    %141 = tpu.concatenate %41, %63, %96, %140 in 1 : vector<2x32xf32>, vector<2x32xf32>, vector<2x32xf32>, vector<2x32xf32> -> vector<2x128xf32>
    %142 = arith.addf %0, %141 : vector<2x128xf32>
    %cst_26 = arith.constant dense<0.000000e+00> : vector<2x128xf32>
    %143 = tpu.matmul %142, %1, %cst_26 {dimension_numbers = #tpu.dot_dimension_numbers<[1], [0], [0], [1], [0, 0, 1, 1], [], []>} : vector<2x128xf32>, vector<128x128xf32>, vector<2x128xf32> -> vector<2x128xf32>
    %144 = arith.subf %142, %143 : vector<2x128xf32>
    %145 = arith.mulf %144, %144 : vector<2x128xf32>
    %cst_27 = arith.constant dense<0.000000e+00> : vector<2x128xf32>
    %146 = tpu.matmul %145, %1, %cst_27 {dimension_numbers = #tpu.dot_dimension_numbers<[1], [0], [0], [1], [0, 0, 1, 1], [], []>} : vector<2x128xf32>, vector<128x128xf32>, vector<2x128xf32> -> vector<2x128xf32>
    %cst_28 = arith.constant 9.99999974E-6 : f32
    %147 = vector.broadcast %cst_28 : f32 to vector<2x128xf32>
    %148 = arith.addf %146, %147 : vector<2x128xf32>
    %149 = math.rsqrt %148 : vector<2x128xf32>
    %150 = arith.mulf %144, %149 : vector<2x128xf32>
    %151 = vector.broadcast %5 : vector<1x128xf32> to vector<2x128xf32>
    %152 = arith.mulf %150, %151 : vector<2x128xf32>
    %153 = vector.broadcast %6 : vector<1x128xf32> to vector<2x128xf32>
    %154 = arith.addf %152, %153 : vector<2x128xf32>
    %c0_29 = arith.constant 0 : index
    %c0_30 = arith.constant 0 : index
    %155 = vector.load %arg3[%c0_29, %c0_30] : memref<128x512xf32, #tpu.memory_space<vmem>>, vector<128x512xf32>
    %cst_31 = arith.constant dense<0.000000e+00> : vector<2x512xf32>
    %156 = tpu.matmul %154, %155, %cst_31 {dimension_numbers = #tpu.dot_dimension_numbers<[1], [0], [0], [1], [0, 0, 1, 1], [], []>} : vector<2x128xf32>, vector<128x512xf32>, vector<2x512xf32> -> vector<2x512xf32>
    %157 = vector.broadcast %8 : vector<1x512xf32> to vector<2x512xf32>
    %158 = arith.addf %156, %157 : vector<2x512xf32>
    %cst_32 = arith.constant 0.000000e+00 : f32
    %159 = vector.broadcast %cst_32 : f32 to vector<2x512xf32>
    %160 = arith.maximumf %158, %159 : vector<2x512xf32>
    %c0_33 = arith.constant 0 : index
    %c0_34 = arith.constant 0 : index
    %161 = vector.load %arg4[%c0_33, %c0_34] : memref<512x128xf32, #tpu.memory_space<vmem>>, vector<512x128xf32>
    %cst_35 = arith.constant dense<0.000000e+00> : vector<2x128xf32>
    %162 = tpu.matmul %160, %161, %cst_35 {dimension_numbers = #tpu.dot_dimension_numbers<[1], [0], [0], [1], [0, 0, 1, 1], [], []>} : vector<2x512xf32>, vector<512x128xf32>, vector<2x128xf32> -> vector<2x128xf32>
    %163 = vector.broadcast %7 : vector<1x128xf32> to vector<2x128xf32>
    %164 = arith.addf %162, %163 : vector<2x128xf32>
    %165 = arith.addf %142, %164 : vector<2x128xf32>
    %c0_36 = arith.constant 0 : index
    %c0_37 = arith.constant 0 : index
    %166 = vector.load %arg8[%c0_36, %c0_37] : memref<2x128xf32, #tpu.memory_space<vmem>>, vector<2x128xf32>
    tpu.vector_store %arg8[%c0_36, %c0_37], %165 {strides = array<i32>} : memref<2x128xf32, #tpu.memory_space<vmem>>, vector<2x128xf32>,
    return
  }
  func.func @transform_0(%arg0: i32) -> (i32, i32) {
    %c0_i32 = arith.constant 0 : i32
    %c0_i32_0 = arith.constant 0 : i32
    return %arg0, %c0_i32 : i32, i32
  }
  func.func @transform_1(%arg0: i32) -> (i32, i32) {
    %c0_i32 = arith.constant 0 : i32
    %c0_i32_0 = arith.constant 0 : i32
    %c0_i32_1 = arith.constant 0 : i32
    return %c0_i32, %c0_i32_0 : i32, i32
  }
  func.func @transform_2(%arg0: i32) -> (i32, i32) {
    %c0_i32 = arith.constant 0 : i32
    %c0_i32_0 = arith.constant 0 : i32
    %c0_i32_1 = arith.constant 0 : i32
    return %c0_i32, %c0_i32_0 : i32, i32
  }
  func.func @transform_3(%arg0: i32) -> (i32, i32) {
    %c0_i32 = arith.constant 0 : i32
    %c0_i32_0 = arith.constant 0 : i32
    %c0_i32_1 = arith.constant 0 : i32
    return %c0_i32, %c0_i32_0 : i32, i32
  }
  func.func @transform_4(%arg0: i32) -> (i32, i32) {
    %c0_i32 = arith.constant 0 : i32
    %c0_i32_0 = arith.constant 0 : i32
    %c0_i32_1 = arith.constant 0 : i32
    return %c0_i32, %c0_i32_0 : i32, i32
  }
  func.func @transform_5(%arg0: i32) -> (i32, i32) {
    %c0_i32 = arith.constant 0 : i32
    %c0_i32_0 = arith.constant 0 : i32
    %c0_i32_1 = arith.constant 0 : i32
    return %c0_i32, %c0_i32_0 : i32, i32
  }
  func.func @transform_6(%arg0: i32) -> (i32, i32) {
    %c0_i32 = arith.constant 0 : i32
    %c0_i32_0 = arith.constant 0 : i32
    %c0_i32_1 = arith.constant 0 : i32
    return %c0_i32, %c0_i32_0 : i32, i32
  }
  func.func @transform_7(%arg0: i32) -> (i32, i32) {
    %c0_i32 = arith.constant 0 : i32
    %c0_i32_0 = arith.constant 0 : i32
    return %arg0, %c0_i32 : i32, i32
  }
}

</mosaic_0001>

<llo_original>
// kernel: tpu_custom_call.1
$region0: #{tpu_custom_call.1}
  #allocation0 [shape = 'u32[]', space=smem, size = 0x4, offset = 0x4, fixed_abs, tag = 'smem constant byte address 0x4 - core index']
  #allocation1 [shape = 'u32[144,128]{1,0:T(1,128)}', space=vmem, size = 0x12000, scoped, tag = 'internal scratch']
  %s0 = inlined_call_operand.hbm [shape: f32[2,128], index: 0, kind: input, shape index: {}]
  %s1 = inlined_call_operand.hbm [shape: f32[128,384], index: 1, kind: input, shape index: {}]
  %s2 = inlined_call_operand.hbm [shape: f32[128,512], index: 2, kind: input, shape index: {}]
  %s3 = inlined_call_operand.hbm [shape: f32[512,128], index: 3, kind: input, shape index: {}]
  %s4 = inlined_call_operand.hbm [shape: f32[128,128], index: 4, kind: input, shape index: {}]
  %s5 = inlined_call_operand.vmem [shape: f32[5,128], index: 5, kind: input, shape index: {}]
  %s6 = inlined_call_operand.vmem [shape: f32[1,512], index: 6, kind: input, shape index: {}]
  %s7 = inlined_call_operand.hbm [shape: f32[2,128], index: 7, kind: output, shape index: {}]
  %s8 = sld [smem:[#allocation0]]
  $region58: #{tpu_custom_call.1} parent=0
    _
  %s10 = ssub.s32 1, %s8
  %s11 = scalar_select 0, %s10, %s8
  $region1: #{tpu_custom_call.1} parent=0
    #allocation2 [shape = 'u8[1024]{0}', space=vmem, size = 0x400, scoped, tag = 'input window, operand 0, single buffered']
    #allocation3 [shape = 's32[1]{0}', space=sflag, size = 0x4, scoped, tag = 'scoped memory for tpu_custom_call.1']
    #allocation4 [shape = 's32[1]{0}', space=sflag, size = 0x4, scoped, tag = 'scoped memory for tpu_custom_call.1']
    #allocation5 [shape = 'u8[196608]{0}', space=vmem, size = 0x30000, scoped, tag = 'input window, operand 1, single buffered']
    #allocation6 [shape = 's32[1]{0}', space=sflag, size = 0x4, scoped, tag = 'scoped memory for tpu_custom_call.1']
    #allocation7 [shape = 'u8[262144]{0}', space=vmem, size = 0x40000, scoped, tag = 'input window, operand 2, single buffered']
    #allocation8 [shape = 'u8[262144]{0}', space=vmem, size = 0x40000, scoped, tag = 'input window, operand 3, single buffered']
    #allocation9 [shape = 's32[1]{0}', space=sflag, size = 0x4, scoped, tag = 'scoped memory for tpu_custom_call.1']
    #allocation10 [shape = 'u8[65536]{0}', space=vmem, size = 0x10000, scoped, tag = 'input window, operand 4, single buffered']
    #allocation11 [shape = 'u8[1024]{0}', space=vmem, size = 0x400, scoped, tag = 'output window, operand 0, single buffered']
    %12 = vsyncpa [#allocation3], 0
    %13 = vsyncpa [#allocation6], 0
    %14 = vsyncpa [#allocation9], 0
    %15 = vsyncpa [#allocation4], 0
    // Predicated region
    $region2: #{tpu_custom_call.1} parent=1 // pred_check
      _
    $region3: #{tpu_custom_call.1} parent=1 // pred_check_branch
      %17 = sbr.rel (0) target = $region5
    $region4: #{tpu_custom_call.1} parent=1 // pred_region
      %s19 = ssub.s32 32, 32
      %20 = vsyncadd [#allocation3], %s19
      %s22 = sshll.u32 [#allocation2], 4
      %s23 = int_to_ptr.vmem [resolvable:$true] %s22
      %25 = dma.hbm_to_vmem [thread:$0]  %s0, 32, %s23, [#allocation3]
    $region5: #{tpu_custom_call.1} parent=1 // pred_fallthru
      _
    // Predicated region
    $region6: #{tpu_custom_call.1} parent=1 // pred_check
      _
    $region7: #{tpu_custom_call.1} parent=1 // pred_check_branch
      %27 = sbr.rel (0) target = $region9
    $region8: #{tpu_custom_call.1} parent=1 // pred_region
      %s29 = ssub.s32 6144, 6144
      %30 = vsyncadd [#allocation6], %s29
      %s31 = sshll.u32 [#allocation5], 4
      %s32 = int_to_ptr.vmem [resolvable:$true] %s31
      %37 = dma.hbm_to_vmem [thread:$0]  %s1, 6144, %s32, [#allocation6], 384, 384, 24
    $region9: #{tpu_custom_call.1} parent=1 // pred_fallthru
      _
    // Predicated region
    $region10: #{tpu_custom_call.1} parent=1 // pred_check
      _
    $region11: #{tpu_custom_call.1} parent=1 // pred_check_branch
      %39 = sbr.rel (0) target = $region13
    $region12: #{tpu_custom_call.1} parent=1 // pred_region
      %s41 = ssub.s32 8192, 8192
      %42 = vsyncadd [#allocation6], %s41
      %s43 = sshll.u32 [#allocation7], 4
      %s44 = int_to_ptr.vmem [resolvable:$true] %s43
      %49 = dma.hbm_to_vmem [thread:$0]  %s2, 8192, %s44, [#allocation6], 512, 512, 32
    $region13: #{tpu_custom_call.1} parent=1 // pred_fallthru
      _
    // Predicated region
    $region14: #{tpu_custom_call.1} parent=1 // pred_check
      _
    $region15: #{tpu_custom_call.1} parent=1 // pred_check_branch
      %51 = sbr.rel (0) target = $region17
    $region16: #{tpu_custom_call.1} parent=1 // pred_region
      %s53 = ssub.s32 8192, 8192
      %54 = vsyncadd [#allocation9], %s53
      %s55 = sshll.u32 [#allocation8], 4
      %s56 = int_to_ptr.vmem [resolvable:$true] %s55
      %61 = dma.hbm_to_vmem [thread:$0]  %s3, 8192, %s56, [#allocation9], 128, 128, 8
    $region17: #{tpu_custom_call.1} parent=1 // pred_fallthru
      _
    // Predicated region
    $region18: #{tpu_custom_call.1} parent=1 // pred_check
      _
    $region19: #{tpu_custom_call.1} parent=1 // pred_check_branch
      %63 = sbr.rel (0) target = $region21
    $region20: #{tpu_custom_call.1} parent=1 // pred_region
      %s65 = ssub.s32 2048, 2048
      %66 = vsyncadd [#allocation9], %s65
      %s67 = sshll.u32 [#allocation10], 4
      %s68 = int_to_ptr.vmem [resolvable:$true] %s67
      %73 = dma.hbm_to_vmem [thread:$0]  %s4, 2048, %s68, [#allocation9], 128, 128, 8
    $region21: #{tpu_custom_call.1} parent=1 // pred_fallthru
      _
    // Predicated region
    $region22: #{tpu_custom_call.1} parent=1 // pred_check
      _
    $region23: #{tpu_custom_call.1} parent=1 // pred_check_branch
      %75 = sbr.rel (0) target = $region25
    $region24: #{tpu_custom_call.1} parent=1 // pred_region
      _
    $region25: #{tpu_custom_call.1} parent=1 // pred_fallthru
      _
    // Predicated region
    $region26: #{tpu_custom_call.1} parent=1 // pred_check
      _
    $region27: #{tpu_custom_call.1} parent=1 // pred_check_branch
      %77 = sbr.rel (0) target = $region29
    $region28: #{tpu_custom_call.1} parent=1 // pred_region
      _
    $region29: #{tpu_custom_call.1} parent=1 // pred_fallthru
      _
    // Predicated region
    $region30: #{tpu_custom_call.1} parent=1 // pred_check
      _
    $region31: #{tpu_custom_call.1} parent=1 // pred_check_branch
      %79 = sbr.rel (0) target = $region33
    $region32: #{tpu_custom_call.1} parent=1 // pred_region
      %80 = dma.done [#allocation3], 32
    $region33: #{tpu_custom_call.1} parent=1 // pred_fallthru
      _
    // Predicated region
    $region34: #{tpu_custom_call.1} parent=1 // pred_check
      _
    $region35: #{tpu_custom_call.1} parent=1 // pred_check_branch
      %82 = sbr.rel (0) target = $region37
    $region36: #{tpu_custom_call.1} parent=1 // pred_region
      %83 = dma.done [#allocation6], 6144
    $region37: #{tpu_custom_call.1} parent=1 // pred_fallthru
      _
    // Predicated region
    $region38: #{tpu_custom_call.1} parent=1 // pred_check
      _
    $region39: #{tpu_custom_call.1} parent=1 // pred_check_branch
      %85 = sbr.rel (0) target = $region41
    $region40: #{tpu_custom_call.1} parent=1 // pred_region
      %86 = dma.done [#allocation6], 8192
    $region41: #{tpu_custom_call.1} parent=1 // pred_fallthru
      _
    // Predicated region
    $region42: #{tpu_custom_call.1} parent=1 // pred_check
      _
    $region43: #{tpu_custom_call.1} parent=1 // pred_check_branch
      %88 = sbr.rel (0) target = $region45
    $region44: #{tpu_custom_call.1} parent=1 // pred_region
      %89 = dma.done [#allocation9], 8192
    $region45: #{tpu_custom_call.1} parent=1 // pred_fallthru
      _
    // Predicated region
    $region46: #{tpu_custom_call.1} parent=1 // pred_check
      _
    $region47: #{tpu_custom_call.1} parent=1 // pred_check_branch
      %91 = sbr.rel (0) target = $region49
    $region48: #{tpu_custom_call.1} parent=1 // pred_region
      %92 = dma.done [#allocation9], 2048
    $region49: #{tpu_custom_call.1} parent=1 // pred_fallthru
      _
    %v93 = vld [vmem:[#allocation2] sm:$0x3]
    %v94 = vld [vmem:[#allocation10] sm:$0xff]
    %v95 = vld [vmem:[#allocation10 + $0x8] sm:$0xff]
    %v96 = vld [vmem:[#allocation10 + $0x10] sm:$0xff]
    %v97 = vld [vmem:[#allocation10 + $0x18] sm:$0xff]
    %v98 = vld [vmem:[#allocation10 + $0x20] sm:$0xff]
    %v99 = vld [vmem:[#allocation10 + $0x28] sm:$0xff]
    %v100 = vld [vmem:[#allocation10 + $0x30] sm:$0xff]
    %v101 = vld [vmem:[#allocation10 + $0x38] sm:$0xff]
    %v102 = vld [vmem:[#allocation10 + $0x40] sm:$0xff]
    %v103 = vld [vmem:[#allocation10 + $0x48] sm:$0xff]
    %v104 = vld [vmem:[#allocation10 + $0x50] sm:$0xff]
    %v105 = vld [vmem:[#allocation10 + $0x58] sm:$0xff]
    %v106 = vld [vmem:[#allocation10 + $0x60] sm:$0xff]
    %v107 = vld [vmem:[#allocation10 + $0x68] sm:$0xff]
    %v108 = vld [vmem:[#allocation10 + $0x70] sm:$0xff]
    %v109 = vld [vmem:[#allocation10 + $0x78] sm:$0xff]
    %v110 = vld [vmem:[%s5] sm:$0x1f]
    %v111 = vld [vmem:[%s6] sm:$0xf]
    %112 = vmatprep.subr.mxu0 0.0
    %113 = vmatpush1.msra.mxu0 %v94
    %114 = vmatprep.subr.mxu0 0.0
    %115 = vmatpush1.msra.mxu0 %v95
    %116 = vmatprep.subr.mxu0 0.0
    %117 = vmatpush1.msra.mxu0 %v96
    %118 = vmatprep.subr.mxu0 0.0
    %119 = vmatpush1.msra.mxu0 %v97
    %120 = vmatprep.subr.mxu0 0.0
    %121 = vmatpush1.msra.mxu0 %v98
    %122 = vmatprep.subr.mxu0 0.0
    %123 = vmatpush1.msra.mxu0 %v99
    %124 = vmatprep.subr.mxu0 0.0
    %125 = vmatpush1.msra.mxu0 %v100
    %126 = vmatprep.subr.mxu0 0.0
    %127 = vmatpush1.msra.mxu0 %v101
    %128 = vmatprep.subr.mxu0 0.0
    %129 = vmatpush1.msra.mxu0 %v102
    %130 = vmatprep.subr.mxu0 0.0
    %131 = vmatpush1.msra.mxu0 %v103
    %132 = vmatprep.subr.mxu0 0.0
    %133 = vmatpush1.msra.mxu0 %v104
    %134 = vmatprep.subr.mxu0 0.0
    %135 = vmatpush1.msra.mxu0 %v105
    %136 = vmatprep.subr.mxu0 0.0
    %137 = vmatpush1.msra.mxu0 %v106
    %138 = vmatprep.subr.mxu0 0.0
    %139 = vmatpush1.msra.mxu0 %v107
    %140 = vmatprep.subr.mxu0 0.0
    %141 = vmatpush1.msra.mxu0 %v108
    %142 = vmatprep.subr.mxu0 0.0
    %143 = vmatpush1.msra.mxu0 %v109
    %144 = vmatprep.subr.mxu0 0.0
    %145 = vmatpush1.msra.mxu0 0.0
    %146 = vmatprep.subr.mxu0 0.0
    %147 = vmatpush1.msra.mxu0 0.0
    %148 = vmatprep.subr.mxu0 0.0
    %149 = vmatpush1.msra.mxu0 0.0
    %150 = vmatprep.subr.mxu0 0.0
    %151 = vmatpush1.msra.mxu0 0.0
    %152 = vmatprep.subr.mxu0 0.0
    %153 = vmatpush1.msra.mxu0 0.0
    %154 = vmatprep.subr.mxu0 0.0
    %155 = vmatpush1.msra.mxu0 0.0
    %156 = vmatprep.subr.mxu0 0.0
    %157 = vmatpush1.msra.mxu0 0.0
    %158 = vmatprep.subr.mxu0 0.0
    %159 = vmatpush1.msra.mxu0 0.0
    %160 = vmatprep.subr.mxu0 0.0
    %161 = vmatpush1.msra.mxu0 0.0
    %162 = vmatprep.subr.mxu0 0.0
    %163 = vmatpush1.msra.mxu0 0.0
    %164 = vmatprep.subr.mxu0 0.0
    %165 = vmatpush1.msra.mxu0 0.0
    %166 = vmatprep.subr.mxu0 0.0
    %167 = vmatpush1.msra.mxu0 0.0
    %168 = vmatprep.subr.mxu0 0.0
    %169 = vmatpush1.msra.mxu0 0.0
    %170 = vmatprep.subr.mxu0 0.0
    %171 = vmatpush1.msra.mxu0 0.0
    %172 = vmatprep.subr.mxu0 0.0
    %173 = vmatpush1.msra.mxu0 0.0
    %174 = vmatprep.subr.mxu0 0.0
    %175 = vmatpush1.msra.mxu0 0.0
    %176 = vmatprep.mubr.f32.mxu0 0.0
    %177 = vmatmul.mubr.f32.gmra.mrb[0].mxu0 %v93
    %v178 = vpop.f32.mrb[0].mxu0
    %v179 = vadd.f32 0.0, %v178
    %v180 = vpop.f32.mrb[0].mxu0
    %181 = vdwg.mxu0
    %v182 = vsub.f32 %v93, %v179
    %v183 = vmul.f32 %v182, %v182
    %184 = vmatprep.subr.mxu0 0.0
    %185 = vmatpush1.msra.mxu0 %v94
    %186 = vmatprep.subr.mxu0 0.0
    %187 = vmatpush1.msra.mxu0 %v95
    %188 = vmatprep.subr.mxu0 0.0
    %189 = vmatpush1.msra.mxu0 %v96
    %190 = vmatprep.subr.mxu0 0.0
    %191 = vmatpush1.msra.mxu0 %v97
    %192 = vmatprep.subr.mxu0 0.0
    %193 = vmatpush1.msra.mxu0 %v98
    %194 = vmatprep.subr.mxu0 0.0
    %195 = vmatpush1.msra.mxu0 %v99
    %196 = vmatprep.subr.mxu0 0.0
    %197 = vmatpush1.msra.mxu0 %v100
    %198 = vmatprep.subr.mxu0 0.0
    %199 = vmatpush1.msra.mxu0 %v101
    %200 = vmatprep.subr.mxu0 0.0
    %201 = vmatpush1.msra.mxu0 %v102
    %202 = vmatprep.subr.mxu0 0.0
    %203 = vmatpush1.msra.mxu0 %v103
    %204 = vmatprep.subr.mxu0 0.0
    %205 = vmatpush1.msra.mxu0 %v104
    %206 = vmatprep.subr.mxu0 0.0
    %207 = vmatpush1.msra.mxu0 %v105
    %208 = vmatprep.subr.mxu0 0.0
    %209 = vmatpush1.msra.mxu0 %v106
    %210 = vmatprep.subr.mxu0 0.0
    %211 = vmatpush1.msra.mxu0 %v107
    %212 = vmatprep.subr.mxu0 0.0
    %213 = vmatpush1.msra.mxu0 %v108
    %214 = vmatprep.subr.mxu0 0.0
    %215 = vmatpush1.msra.mxu0 %v109
    %216 = vmatprep.subr.mxu0 0.0
    %217 = vmatpush1.msra.mxu0 0.0
    %218 = vmatprep.subr.mxu0 0.0
    %219 = vmatpush1.msra.mxu0 0.0
    %220 = vmatprep.subr.mxu0 0.0
    %221 = vmatpush1.msra.mxu0 0.0
    %222 = vmatprep.subr.mxu0 0.0
    %223 = vmatpush1.msra.mxu0 0.0
    %224 = vmatprep.subr.mxu0 0.0
    %225 = vmatpush1.msra.mxu0 0.0
    %226 = vmatprep.subr.mxu0 0.0
    %227 = vmatpush1.msra.mxu0 0.0
    %228 = vmatprep.subr.mxu0 0.0
    %229 = vmatpush1.msra.mxu0 0.0
    %230 = vmatprep.subr.mxu0 0.0
    %231 = vmatpush1.msra.mxu0 0.0
    %232 = vmatprep.subr.mxu0 0.0
    %233 = vmatpush1.msra.mxu0 0.0
    %234 = vmatprep.subr.mxu0 0.0
    %235 = vmatpush1.msra.mxu0 0.0
    %236 = vmatprep.subr.mxu0 0.0
    %237 = vmatpush1.msra.mxu0 0.0
    %238 = vmatprep.subr.mxu0 0.0
    %239 = vmatpush1.msra.mxu0 0.0
    %240 = vmatprep.subr.mxu0 0.0
    %241 = vmatpush1.msra.mxu0 0.0
    %242 = vmatprep.subr.mxu0 0.0
    %243 = vmatpush1.msra.mxu0 0.0
    %244 = vmatprep.subr.mxu0 0.0
    %245 = vmatpush1.msra.mxu0 0.0
    %246 = vmatprep.subr.mxu0 0.0
    %247 = vmatpush1.msra.mxu0 0.0
    %248 = vmatprep.mubr.f32.mxu0 0.0
    %249 = vmatmul.mubr.f32.gmra.mrb[0].mxu0 %v183
    %v250 = vpop.f32.mrb[0].mxu0
    %v251 = vadd.f32 1e-05, %v250
    %v252 = vpop.f32.mrb[0].mxu0
    %253 = vdwg.mxu0
    %v254 = vrsqrt.pop %v251
    %v255 = vmul.f32 %v182, %v254
    %v256 = vlaneseq
    %v257 = vshrl.u32 %v256, 7
    %v258 = vsub.s32 0, %v257
    %v259 = vrot.slane %v110, %v258
    %v260 = vmul.f32 %v255, %v259
    %v261 = vlaneseq
    %v262 = vshrl.u32 %v261, 7
    %v263 = vsub.s32 1, %v262
    %v264 = vrot.slane %v110, %v263
    %v265 = vadd.f32 %v260, %v264
    %v266 = vld [vmem:[#allocation5] sm:$0xff]
    %v267 = vld [vmem:[#allocation5 + $0x8] sm:$0xff]
    %v268 = vld [vmem:[#allocation5 + $0x10] sm:$0xff]
    %v269 = vld [vmem:[#allocation5 + $0x18] sm:$0xff]
    %v270 = vld [vmem:[#allocation5 + $0x20] sm:$0xff]
    %v271 = vld [vmem:[#allocation5 + $0x28] sm:$0xff]
    %v272 = vld [vmem:[#allocation5 + $0x30] sm:$0xff]
    %v273 = vld [vmem:[#allocation5 + $0x38] sm:$0xff]
    %v274 = vld [vmem:[#allocation5 + $0x40] sm:$0xff]
    %v275 = vld [vmem:[#allocation5 + $0x48] sm:$0xff]
    %v276 = vld [vmem:[#allocation5 + $0x50] sm:$0xff]
    %v277 = vld [vmem:[#allocation5 + $0x58] sm:$0xff]
    %v278 = vld [vmem:[#allocation5 + $0x60] sm:$0xff]
    %v279 = vld [vmem:[#allocation5 + $0x68] sm:$0xff]
    %v280 = vld [vmem:[#allocation5 + $0x70] sm:$0xff]
    %v281 = vld [vmem:[#allocation5 + $0x78] sm:$0xff]
    %v282 = vld [vmem:[#allocation5 + $0x80] sm:$0xff]
    %v283 = vld [vmem:[#allocation5 + $0x88] sm:$0xff]
    %v284 = vld [vmem:[#allocation5 + $0x90] sm:$0xff]
    %v285 = vld [vmem:[#allocation5 + $0x98] sm:$0xff]
    %v286 = vld [vmem:[#allocation5 + $0xa0] sm:$0xff]
    %v287 = vld [vmem:[#allocation5 + $0xa8] sm:$0xff]
    %v288 = vld [vmem:[#allocation5 + $0xb0] sm:$0xff]
    %v289 = vld [vmem:[#allocation5 + $0xb8] sm:$0xff]
    %v290 = vld [vmem:[#allocation5 + $0xc0] sm:$0xff]
    %v291 = vld [vmem:[#allocation5 + $0xc8] sm:$0xff]
    %v292 = vld [vmem:[#allocation5 + $0xd0] sm:$0xff]
    %v293 = vld [vmem:[#allocation5 + $0xd8] sm:$0xff]
    %v294 = vld [vmem:[#allocation5 + $0xe0] sm:$0xff]
    %v295 = vld [vmem:[#allocation5 + $0xe8] sm:$0xff]
    %v296 = vld [vmem:[#allocation5 + $0xf0] sm:$0xff]
    %v297 = vld [vmem:[#allocation5 + $0xf8] sm:$0xff]
    %v298 = vld [vmem:[#allocation5 + $0x100] sm:$0xff]
    %v299 = vld [vmem:[#allocation5 + $0x108] sm:$0xff]
    %v300 = vld [vmem:[#allocation5 + $0x110] sm:$0xff]
    %v301 = vld [vmem:[#allocation5 + $0x118] sm:$0xff]
    %v302 = vld [vmem:[#allocation5 + $0x120] sm:$0xff]
    %v303 = vld [vmem:[#allocation5 + $0x128] sm:$0xff]
    %v304 = vld [vmem:[#allocation5 + $0x130] sm:$0xff]
    %v305 = vld [vmem:[#allocation5 + $0x138] sm:$0xff]
    %v306 = vld [vmem:[#allocation5 + $0x140] sm:$0xff]
    %v307 = vld [vmem:[#allocation5 + $0x148] sm:$0xff]
    %v308 = vld [vmem:[#allocation5 + $0x150] sm:$0xff]
    %v309 = vld [vmem:[#allocation5 + $0x158] sm:$0xff]
    %v310 = vld [vmem:[#allocation5 + $0x160] sm:$0xff]
    %v311 = vld [vmem:[#allocation5 + $0x168] sm:$0xff]
    %v312 = vld [vmem:[#allocation5 + $0x170] sm:$0xff]
    %v313 = vld [vmem:[#allocation5 + $0x178] sm:$0xff]
    %314 = vmatprep.subr.mxu0 %v267
    %315 = vmatpush1.msra.mxu0 %v266
    %316 = vmatprep.subr.mxu0 %v270
    %317 = vmatpush1.msra.mxu0 %v269
    %318 = vmatprep.subr.mxu0 %v273
    %319 = vmatpush1.msra.mxu0 %v272
    %320 = vmatprep.subr.mxu0 %v276
    %321 = vmatpush1.msra.mxu0 %v275
    %322 = vmatprep.subr.mxu0 %v279
    %323 = vmatpush1.msra.mxu0 %v278
    %324 = vmatprep.subr.mxu0 %v282
    %325 = vmatpush1.msra.mxu0 %v281
    %326 = vmatprep.subr.mxu0 %v285
    %327 = vmatpush1.msra.mxu0 %v284
    %328 = vmatprep.subr.mxu0 %v288
    %329 = vmatpush1.msra.mxu0 %v287
    %330 = vmatprep.subr.mxu0 %v291
    %331 = vmatpush1.msra.mxu0 %v290
    %332 = vmatprep.subr.mxu0 %v294
    %333 = vmatpush1.msra.mxu0 %v293
    %334 = vmatprep.subr.mxu0 %v297
    %335 = vmatpush1.msra.mxu0 %v296
    %336 = vmatprep.subr.mxu0 %v300
    %337 = vmatpush1.msra.mxu0 %v299
    %338 = vmatprep.subr.mxu0 %v303
    %339 = vmatpush1.msra.mxu0 %v302
    %340 = vmatprep.subr.mxu0 %v306
    %341 = vmatpush1.msra.mxu0 %v305
    %342 = vmatprep.subr.mxu0 %v309
    %343 = vmatpush1.msra.mxu0 %v308
    %344 = vmatprep.subr.mxu0 %v312
    %345 = vmatpush1.msra.mxu0 %v311
    %346 = vmatprep.subr.mxu0 0.0
    %347 = vmatpush1.msra.mxu0 0.0
    %348 = vmatprep.subr.mxu0 0.0
    %349 = vmatpush1.msra.mxu0 0.0
    %350 = vmatprep.subr.mxu0 0.0
    %351 = vmatpush1.msra.mxu0 0.0
    %352 = vmatprep.subr.mxu0 0.0
    %353 = vmatpush1.msra.mxu0 0.0
    %354 = vmatprep.subr.mxu0 0.0
    %355 = vmatpush1.msra.mxu0 0.0
    %356 = vmatprep.subr.mxu0 0.0
    %357 = vmatpush1.msra.mxu0 0.0
    %358 = vmatprep.subr.mxu0 0.0
    %359 = vmatpush1.msra.mxu0 0.0
    %360 = vmatprep.subr.mxu0 0.0
    %361 = vmatpush1.msra.mxu0 0.0
    %362 = vmatprep.subr.mxu0 0.0
    %363 = vmatpush1.msra.mxu0 0.0
    %364 = vmatprep.subr.mxu0 0.0
    %365 = vmatpush1.msra.mxu0 0.0
    %366 = vmatprep.subr.mxu0 0.0
    %367 = vmatpush1.msra.mxu0 0.0
    %368 = vmatprep.subr.mxu0 0.0
    %369 = vmatpush1.msra.mxu0 0.0
    %370 = vmatprep.subr.mxu0 0.0
    %371 = vmatpush1.msra.mxu0 0.0
    %372 = vmatprep.subr.mxu0 0.0
    %373 = vmatpush1.msra.mxu0 0.0
    %374 = vmatprep.subr.mxu0 0.0
    %375 = vmatpush1.msra.mxu0 0.0
    %376 = vmatprep.subr.mxu0 0.0
    %377 = vmatpush1.msra.mxu0 0.0
    %378 = vmatprep.mubr.f32.mxu0 0.0
    %379 = vmatmul.mubr.f32.gmra.mrb[0].mxu0 %v265
    %v380 = vpop.f32.mrb[0].mxu0
    %v381 = vadd.f32 0.0, %v380
    %v382 = vpop.f32.mrb[0].mxu0
    %v383 = vadd.f32 0.0, %v382
    %384 = vdwg.mxu0
    %385 = vmatprep.subr.mxu0 0.0
    %386 = vmatpush1.msra.mxu0 %v268
    %387 = vmatprep.subr.mxu0 0.0
    %388 = vmatpush1.msra.mxu0 %v271
    %389 = vmatprep.subr.mxu0 0.0
    %390 = vmatpush1.msra.mxu0 %v274
    %391 = vmatprep.subr.mxu0 0.0
    %392 = vmatpush1.msra.mxu0 %v277
    %393 = vmatprep.subr.mxu0 0.0
    %394 = vmatpush1.msra.mxu0 %v280
    %395 = vmatprep.subr.mxu0 0.0
    %396 = vmatpush1.msra.mxu0 %v283
    %397 = vmatprep.subr.mxu0 0.0
    %398 = vmatpush1.msra.mxu0 %v286
    %399 = vmatprep.subr.mxu0 0.0
    %400 = vmatpush1.msra.mxu0 %v289
    %401 = vmatprep.subr.mxu0 0.0
    %402 = vmatpush1.msra.mxu0 %v292
    %403 = vmatprep.subr.mxu0 0.0
    %404 = vmatpush1.msra.mxu0 %v295
    %405 = vmatprep.subr.mxu0 0.0
    %406 = vmatpush1.msra.mxu0 %v298
    %407 = vmatprep.subr.mxu0 0.0
    %408 = vmatpush1.msra.mxu0 %v301
    %409 = vmatprep.subr.mxu0 0.0
    %410 = vmatpush1.msra.mxu0 %v304
    %411 = vmatprep.subr.mxu0 0.0
    %412 = vmatpush1.msra.mxu0 %v307
    %413 = vmatprep.subr.mxu0 0.0
    %414 = vmatpush1.msra.mxu0 %v310
    %415 = vmatprep.subr.mxu0 0.0
    %416 = vmatpush1.msra.mxu0 %v313
    %417 = vmatprep.subr.mxu0 0.0
    %418 = vmatpush1.msra.mxu0 0.0
    %419 = vmatprep.subr.mxu0 0.0
    %420 = vmatpush1.msra.mxu0 0.0
    %421 = vmatprep.subr.mxu0 0.0
    %422 = vmatpush1.msra.mxu0 0.0
    %423 = vmatprep.subr.mxu0 0.0
    %424 = vmatpush1.msra.mxu0 0.0
    %425 = vmatprep.subr.mxu0 0.0
    %426 = vmatpush1.msra.mxu0 0.0
    %427 = vmatprep.subr.mxu0 0.0
    %428 = vmatpush1.msra.mxu0 0.0
    %429 = vmatprep.subr.mxu0 0.0
    %430 = vmatpush1.msra.mxu0 0.0
    %431 = vmatprep.subr.mxu0 0.0
    %432 = vmatpush1.msra.mxu0 0.0
    %433 = vmatprep.subr.mxu0 0.0
    %434 = vmatpush1.msra.mxu0 0.0
    %435 = vmatprep.subr.mxu0 0.0
    %436 = vmatpush1.msra.mxu0 0.0
    %437 = vmatprep.subr.mxu0 0.0
    %438 = vmatpush1.msra.mxu0 0.0
    %439 = vmatprep.subr.mxu0 0.0
    %440 = vmatpush1.msra.mxu0 0.0
    %441 = vmatprep.subr.mxu0 0.0
    %442 = vmatpush1.msra.mxu0 0.0
    %443 = vmatprep.subr.mxu0 0.0
    %444 = vmatpush1.msra.mxu0 0.0
    %445 = vmatprep.subr.mxu0 0.0
    %446 = vmatpush1.msra.mxu0 0.0
    %447 = vmatprep.subr.mxu0 0.0
    %448 = vmatpush1.msra.mxu0 0.0
    %449 = vmatprep.mubr.f32.mxu0 0.0
    %450 = vmatmul.mubr.f32.gmra.mrb[0].mxu0 %v265
    %v451 = vpop.f32.mrb[0].mxu0
    %v452 = vadd.f32 0.0, %v451
    %v453 = vpop.f32.mrb[0].mxu0
    %454 = vdwg.mxu0
    %v455 = vmul.f32 %v381, %v383
    %vm456 = vcmask 254976
    %v457 = vsel %vm456, %v455, 0.0
    %458 = vadd.xlane.f32.xlu0 %v457
    %v459 = vpop.xlane.xlu0 %458
    %v460 = vsub.f32 %v459, %v459
    %v461 = vmul.f32 %v460, 1.442695
    %v462 = vpow.pop %v461
    %v463 = vrcp.pop %v462
    %v464 = vmul.f32 1.0, %v463
    %v465 = vmul.f32 %v462, %v464
    %v466 = vmul.f32 %v465, %v452
    %468 = vrot.lane.b32.xlu0 %v383, 32
    %v469 = vpop.permute.xlu0 %468
    %v471 = vmul.f32 %v381, %v469
    %473 = vrot.lane.b32.xlu0 %v471, 96
    %v474 = vpop.permute.xlu0 %473
    %v476 = vsel %vm456, %v474, 0.0
    %477 = vadd.xlane.f32.xlu0 %v476
    %v478 = vpop.xlane.xlu0 %477
    %480 = vrot.lane.b32.xlu0 %v455, 96
    %v481 = vpop.permute.xlu0 %480
    %v483 = vsel %vm456, %v481, 0.0
    %484 = vadd.xlane.f32.xlu0 %v483
    %v485 = vpop.xlane.xlu0 %484
    %v486 = vmax.f32 %v478, %v485
    %v487 = vsub.f32 %v478, %v486
    %v488 = vmul.f32 %v487, 1.442695
    %v489 = vpow.pop %v488
    %v490 = vsub.f32 %v485, %v486
    %v491 = vmul.f32 %v490, 1.442695
    %v492 = vpow.pop %v491
    %v493 = vadd.f32 %v489, %v492
    %v494 = vrcp.pop %v493
    %v495 = vmul.f32 1.0, %v494
    %v496 = vmul.f32 %v489, %v495
    %v497 = vmul.f32 %v496, %v452
    %v498 = vmul.f32 %v492, %v495
    %v499 = vmul.f32 %v498, %v452
    %501 = vrot.lane.b32.xlu0 %v499, 96
    %v502 = vpop.permute.xlu0 %501
    %v504 = vadd.f32 %v497, %v502
    %505 = vrot.lane.b32.xlu0 %v383, 64
    %v506 = vpop.permute.xlu0 %505
    %v508 = vmul.f32 %v381, %v506
    %510 = vrot.lane.b32.xlu0 %v508, 64
    %v511 = vpop.permute.xlu0 %510
    %v513 = vsel %vm456, %v511, 0.0
    %514 = vadd.xlane.f32.xlu0 %v513
    %v515 = vpop.xlane.xlu0 %514
    %516 = vrot.lane.b32.xlu0 %v471, 64
    %v517 = vpop.permute.xlu0 %516
    %v519 = vsel %vm456, %v517, 0.0
    %520 = vadd.xlane.f32.xlu0 %v519
    %v521 = vpop.xlane.xlu0 %520
    %522 = vrot.lane.b32.xlu0 %v455, 64
    %v523 = vpop.permute.xlu0 %522
    %v525 = vsel %vm456, %v523, 0.0
    %526 = vadd.xlane.f32.xlu0 %v525
    %v527 = vpop.xlane.xlu0 %526
    %v528 = vmax.f32 %v515, %v521
    %v529 = vmax.f32 %v528, %v527
    %v530 = vsub.f32 %v515, %v529
    %v531 = vmul.f32 %v530, 1.442695
    %v532 = vpow.pop %v531
    %v533 = vsub.f32 %v521, %v529
    %v534 = vmul.f32 %v533, 1.442695
    %v535 = vpow.pop %v534
    %v536 = vsub.f32 %v527, %v529
    %v537 = vmul.f32 %v536, 1.442695
    %v538 = vpow.pop %v537
    %v539 = vadd.f32 %v532, %v535
    %v540 = vadd.f32 %v539, %v538
    %v541 = vrcp.pop %v540
    %v542 = vmul.f32 1.0, %v541
    %v543 = vmul.f32 %v532, %v542
    %v544 = vmul.f32 %v543, %v452
    %v545 = vmul.f32 %v535, %v542
    %v546 = vmul.f32 %v545, %v452
    %548 = vrot.lane.b32.xlu0 %v546, 96
    %v549 = vpop.permute.xlu0 %548
    %v551 = vadd.f32 %v544, %v549
    %v552 = vmul.f32 %v538, %v542
    %v553 = vmul.f32 %v552, %v452
    %555 = vrot.lane.b32.xlu0 %v553, 64
    %v556 = vpop.permute.xlu0 %555
    %v558 = vadd.f32 %v551, %v556
    %559 = vrot.lane.b32.xlu0 %v383, 96
    %v560 = vpop.permute.xlu0 %559
    %v562 = vmul.f32 %v381, %v560
    %564 = vrot.lane.b32.xlu0 %v562, 32
    %v565 = vpop.permute.xlu0 %564
    %v567 = vsel %vm456, %v565, 0.0
    %568 = vadd.xlane.f32.xlu0 %v567
    %v569 = vpop.xlane.xlu0 %568
    %570 = vrot.lane.b32.xlu0 %v508, 32
    %v571 = vpop.permute.xlu0 %570
    %v573 = vsel %vm456, %v571, 0.0
    %574 = vadd.xlane.f32.xlu0 %v573
    %v575 = vpop.xlane.xlu0 %574
    %576 = vrot.lane.b32.xlu0 %v471, 32
    %v577 = vpop.permute.xlu0 %576
    %v579 = vsel %vm456, %v577, 0.0
    %580 = vadd.xlane.f32.xlu0 %v579
    %v581 = vpop.xlane.xlu0 %580
    %582 = vrot.lane.b32.xlu0 %v455, 32
    %v583 = vpop.permute.xlu0 %582
    %v585 = vsel %vm456, %v583, 0.0
    %586 = vadd.xlane.f32.xlu0 %v585
    %v587 = vpop.xlane.xlu0 %586
    %v588 = vmax.f32 %v569, %v575
    %v589 = vmax.f32 %v588, %v581
    %v590 = vmax.f32 %v589, %v587
    %v591 = vsub.f32 %v569, %v590
    %v592 = vmul.f32 %v591, 1.442695
    %v593 = vpow.pop %v592
    %v594 = vsub.f32 %v575, %v590
    %v595 = vmul.f32 %v594, 1.442695
    %v596 = vpow.pop %v595
    %v597 = vsub.f32 %v581, %v590
    %v598 = vmul.f32 %v597, 1.442695
    %v599 = vpow.pop %v598
    %v600 = vsub.f32 %v587, %v590
    %v601 = vmul.f32 %v600, 1.442695
    %v602 = vpow.pop %v601
    %v603 = vadd.f32 %v593, %v596
    %v604 = vadd.f32 %v603, %v599
    %v605 = vadd.f32 %v604, %v602
    %v606 = vrcp.pop %v605
    %v607 = vmul.f32 1.0, %v606
    %v608 = vmul.f32 %v593, %v607
    %v609 = vmul.f32 %v608, %v452
    %v610 = vmul.f32 %v596, %v607
    %v611 = vmul.f32 %v610, %v452
    %613 = vrot.lane.b32.xlu0 %v611, 96
    %v614 = vpop.permute.xlu0 %613
    %v616 = vadd.f32 %v609, %v614
    %v617 = vmul.f32 %v599, %v607
    %v618 = vmul.f32 %v617, %v452
    %620 = vrot.lane.b32.xlu0 %v618, 64
    %v621 = vpop.permute.xlu0 %620
    %v623 = vadd.f32 %v616, %v621
    %v624 = vmul.f32 %v602, %v607
    %v625 = vmul.f32 %v624, %v452
    %627 = vrot.lane.b32.xlu0 %v625, 32
    %v628 = vpop.permute.xlu0 %627
    %v630 = vadd.f32 %v623, %v628
    %632 = vrot.lane.b32.xlu0 %v504, 32
    %v633 = vpop.permute.xlu0 %632
    %636 = vrot.lane.b32.xlu0 %v558, 64
    %v637 = vpop.permute.xlu0 %636
    %640 = vrot.lane.b32.xlu0 %v630, 96
    %v641 = vpop.permute.xlu0 %640
    %vm643 = vcmask 261120
    %v644 = vsel %vm643, %v466, %v633
    %vm645 = vcmask 523264
    %v646 = vsel %vm645, %v644, %v637
    %vm647 = vcmask 785408
    %v648 = vsel %vm647, %v646, %v641
    %v649 = vadd.f32 %v93, %v648
    %650 = vmatprep.subr.mxu0 0.0
    %651 = vmatpush1.msra.mxu0 %v94
    %652 = vmatprep.subr.mxu0 0.0
    %653 = vmatpush1.msra.mxu0 %v95
    %654 = vmatprep.subr.mxu0 0.0
    %655 = vmatpush1.msra.mxu0 %v96
    %656 = vmatprep.subr.mxu0 0.0
    %657 = vmatpush1.msra.mxu0 %v97
    %658 = vmatprep.subr.mxu0 0.0
    %659 = vmatpush1.msra.mxu0 %v98
    %660 = vmatprep.subr.mxu0 0.0
    %661 = vmatpush1.msra.mxu0 %v99
    %662 = vmatprep.subr.mxu0 0.0
    %663 = vmatpush1.msra.mxu0 %v100
    %664 = vmatprep.subr.mxu0 0.0
    %665 = vmatpush1.msra.mxu0 %v101
    %666 = vmatprep.subr.mxu0 0.0
    %667 = vmatpush1.msra.mxu0 %v102
    %668 = vmatprep.subr.mxu0 0.0
    %669 = vmatpush1.msra.mxu0 %v103
    %670 = vmatprep.subr.mxu0 0.0
    %671 = vmatpush1.msra.mxu0 %v104
    %672 = vmatprep.subr.mxu0 0.0
    %673 = vmatpush1.msra.mxu0 %v105
    %674 = vmatprep.subr.mxu0 0.0
    %675 = vmatpush1.msra.mxu0 %v106
    %676 = vmatprep.subr.mxu0 0.0
    %677 = vmatpush1.msra.mxu0 %v107
    %678 = vmatprep.subr.mxu0 0.0
    %679 = vmatpush1.msra.mxu0 %v108
    %680 = vmatprep.subr.mxu0 0.0
    %681 = vmatpush1.msra.mxu0 %v109
    %682 = vmatprep.subr.mxu0 0.0
    %683 = vmatpush1.msra.mxu0 0.0
    %684 = vmatprep.subr.mxu0 0.0
    %685 = vmatpush1.msra.mxu0 0.0
    %686 = vmatprep.subr.mxu0 0.0
    %687 = vmatpush1.msra.mxu0 0.0
    %688 = vmatprep.subr.mxu0 0.0
    %689 = vmatpush1.msra.mxu0 0.0
    %690 = vmatprep.subr.mxu0 0.0
    %691 = vmatpush1.msra.mxu0 0.0
    %692 = vmatprep.subr.mxu0 0.0
    %693 = vmatpush1.msra.mxu0 0.0
    %694 = vmatprep.subr.mxu0 0.0
    %695 = vmatpush1.msra.mxu0 0.0
    %696 = vmatprep.subr.mxu0 0.0
    %697 = vmatpush1.msra.mxu0 0.0
    %698 = vmatprep.subr.mxu0 0.0
    %699 = vmatpush1.msra.mxu0 0.0
    %700 = vmatprep.subr.mxu0 0.0
    %701 = vmatpush1.msra.mxu0 0.0
    %702 = vmatprep.subr.mxu0 0.0
    %703 = vmatpush1.msra.mxu0 0.0
    %704 = vmatprep.subr.mxu0 0.0
    %705 = vmatpush1.msra.mxu0 0.0
    %706 = vmatprep.subr.mxu0 0.0
    %707 = vmatpush1.msra.mxu0 0.0
    %708 = vmatprep.subr.mxu0 0.0
    %709 = vmatpush1.msra.mxu0 0.0
    %710 = vmatprep.subr.mxu0 0.0
    %711 = vmatpush1.msra.mxu0 0.0
    %712 = vmatprep.subr.mxu0 0.0
    %713 = vmatpush1.msra.mxu0 0.0
    %714 = vmatprep.mubr.f32.mxu0 0.0
    %715 = vmatmul.mubr.f32.gmra.mrb[0].mxu0 %v649
    %v716 = vpop.f32.mrb[0].mxu0
    %v717 = vadd.f32 0.0, %v716
    %v718 = vpop.f32.mrb[0].mxu0
    %719 = vdwg.mxu0
    %v720 = vsub.f32 %v649, %v717
    %v721 = vmul.f32 %v720, %v720
    %722 = vmatprep.subr.mxu0 0.0
    %723 = vmatpush1.msra.mxu0 %v94
    %724 = vmatprep.subr.mxu0 0.0
    %725 = vmatpush1.msra.mxu0 %v95
    %726 = vmatprep.subr.mxu0 0.0
    %727 = vmatpush1.msra.mxu0 %v96
    %728 = vmatprep.subr.mxu0 0.0
    %729 = vmatpush1.msra.mxu0 %v97
    %730 = vmatprep.subr.mxu0 0.0
    %731 = vmatpush1.msra.mxu0 %v98
    %732 = vmatprep.subr.mxu0 0.0
    %733 = vmatpush1.msra.mxu0 %v99
    %734 = vmatprep.subr.mxu0 0.0
    %735 = vmatpush1.msra.mxu0 %v100
    %736 = vmatprep.subr.mxu0 0.0
    %737 = vmatpush1.msra.mxu0 %v101
    %738 = vmatprep.subr.mxu0 0.0
    %739 = vmatpush1.msra.mxu0 %v102
    %740 = vmatprep.subr.mxu0 0.0
    %741 = vmatpush1.msra.mxu0 %v103
    %742 = vmatprep.subr.mxu0 0.0
    %743 = vmatpush1.msra.mxu0 %v104
    %744 = vmatprep.subr.mxu0 0.0
    %745 = vmatpush1.msra.mxu0 %v105
    %746 = vmatprep.subr.mxu0 0.0
    %747 = vmatpush1.msra.mxu0 %v106
    %748 = vmatprep.subr.mxu0 0.0
    %749 = vmatpush1.msra.mxu0 %v107
    %750 = vmatprep.subr.mxu0 0.0
    %751 = vmatpush1.msra.mxu0 %v108
    %752 = vmatprep.subr.mxu0 0.0
    %753 = vmatpush1.msra.mxu0 %v109
    %754 = vmatprep.subr.mxu0 0.0
    %755 = vmatpush1.msra.mxu0 0.0
    %756 = vmatprep.subr.mxu0 0.0
    %757 = vmatpush1.msra.mxu0 0.0
    %758 = vmatprep.subr.mxu0 0.0
    %759 = vmatpush1.msra.mxu0 0.0
    %760 = vmatprep.subr.mxu0 0.0
    %761 = vmatpush1.msra.mxu0 0.0
    %762 = vmatprep.subr.mxu0 0.0
    %763 = vmatpush1.msra.mxu0 0.0
    %764 = vmatprep.subr.mxu0 0.0
    %765 = vmatpush1.msra.mxu0 0.0
    %766 = vmatprep.subr.mxu0 0.0
    %767 = vmatpush1.msra.mxu0 0.0
    %768 = vmatprep.subr.mxu0 0.0
    %769 = vmatpush1.msra.mxu0 0.0
    %770 = vmatprep.subr.mxu0 0.0
    %771 = vmatpush1.msra.mxu0 0.0
    %772 = vmatprep.subr.mxu0 0.0
    %773 = vmatpush1.msra.mxu0 0.0
    %774 = vmatprep.subr.mxu0 0.0
    %775 = vmatpush1.msra.mxu0 0.0
    %776 = vmatprep.subr.mxu0 0.0
    %777 = vmatpush1.msra.mxu0 0.0
    %778 = vmatprep.subr.mxu0 0.0
    %779 = vmatpush1.msra.mxu0 0.0
    %780 = vmatprep.subr.mxu0 0.0
    %781 = vmatpush1.msra.mxu0 0.0
    %782 = vmatprep.subr.mxu0 0.0
    %783 = vmatpush1.msra.mxu0 0.0
    %784 = vmatprep.subr.mxu0 0.0
    %785 = vmatpush1.msra.mxu0 0.0
    %786 = vmatprep.mubr.f32.mxu0 0.0
    %787 = vmatmul.mubr.f32.gmra.mrb[0].mxu0 %v721
    %v788 = vpop.f32.mrb[0].mxu0
    %v789 = vadd.f32 1e-05, %v788
    %v790 = vpop.f32.mrb[0].mxu0
    %791 = vdwg.mxu0
    %v792 = vrsqrt.pop %v789
    %v793 = vmul.f32 %v720, %v792
    %v794 = vlaneseq
    %v795 = vshrl.u32 %v794, 7
    %v796 = vsub.s32 2, %v795
    %v797 = vrot.slane %v110, %v796
    %v798 = vmul.f32 %v793, %v797
    %v799 = vlaneseq
    %v800 = vshrl.u32 %v799, 7
    %v801 = vsub.s32 3, %v800
    %v802 = vrot.slane %v110, %v801
    %v803 = vadd.f32 %v798, %v802
    %v804 = vld [vmem:[#allocation7] sm:$0xff]
    %v805 = vld [vmem:[#allocation7 + $0x8] sm:$0xff]
    %v806 = vld [vmem:[#allocation7 + $0x10] sm:$0xff]
    %v807 = vld [vmem:[#allocation7 + $0x18] sm:$0xff]
    %v808 = vld [vmem:[#allocation7 + $0x20] sm:$0xff]
    %v809 = vld [vmem:[#allocation7 + $0x28] sm:$0xff]
    %v810 = vld [vmem:[#allocation7 + $0x30] sm:$0xff]
    %v811 = vld [vmem:[#allocation7 + $0x38] sm:$0xff]
    %v812 = vld [vmem:[#allocation7 + $0x40] sm:$0xff]
    %v813 = vld [vmem:[#allocation7 + $0x48] sm:$0xff]
    %v814 = vld [vmem:[#allocation7 + $0x50] sm:$0xff]
    %v815 = vld [vmem:[#allocation7 + $0x58] sm:$0xff]
    %v816 = vld [vmem:[#allocation7 + $0x60] sm:$0xff]
    %v817 = vld [vmem:[#allocation7 + $0x68] sm:$0xff]
    %v818 = vld [vmem:[#allocation7 + $0x70] sm:$0xff]
    %v819 = vld [vmem:[#allocation7 + $0x78] sm:$0xff]
    %v820 = vld [vmem:[#allocation7 + $0x80] sm:$0xff]
    %v821 = vld [vmem:[#allocation7 + $0x88] sm:$0xff]
    %v822 = vld [vmem:[#allocation7 + $0x90] sm:$0xff]
    %v823 = vld [vmem:[#allocation7 + $0x98] sm:$0xff]
    %v824 = vld [vmem:[#allocation7 + $0xa0] sm:$0xff]
    %v825 = vld [vmem:[#allocation7 + $0xa8] sm:$0xff]
    %v826 = vld [vmem:[#allocation7 + $0xb0] sm:$0xff]
    %v827 = vld [vmem:[#allocation7 + $0xb8] sm:$0xff]
    %v828 = vld [vmem:[#allocation7 + $0xc0] sm:$0xff]
    %v829 = vld [vmem:[#allocation7 + $0xc8] sm:$0xff]
    %v830 = vld [vmem:[#allocation7 + $0xd0] sm:$0xff]
    %v831 = vld [vmem:[#allocation7 + $0xd8] sm:$0xff]
    %v832 = vld [vmem:[#allocation7 + $0xe0] sm:$0xff]
    %v833 = vld [vmem:[#allocation7 + $0xe8] sm:$0xff]
    %v834 = vld [vmem:[#allocation7 + $0xf0] sm:$0xff]
    %v835 = vld [vmem:[#allocation7 + $0xf8] sm:$0xff]
    %v836 = vld [vmem:[#allocation7 + $0x100] sm:$0xff]
    %v837 = vld [vmem:[#allocation7 + $0x108] sm:$0xff]
    %v838 = vld [vmem:[#allocation7 + $0x110] sm:$0xff]
    %v839 = vld [vmem:[#allocation7 + $0x118] sm:$0xff]
    %v840 = vld [vmem:[#allocation7 + $0x120] sm:$0xff]
    %v841 = vld [vmem:[#allocation7 + $0x128] sm:$0xff]
    %v842 = vld [vmem:[#allocation7 + $0x130] sm:$0xff]
    %v843 = vld [vmem:[#allocation7 + $0x138] sm:$0xff]
    %v844 = vld [vmem:[#allocation7 + $0x140] sm:$0xff]
    %v845 = vld [vmem:[#allocation7 + $0x148] sm:$0xff]
    %v846 = vld [vmem:[#allocation7 + $0x150] sm:$0xff]
    %v847 = vld [vmem:[#allocation7 + $0x158] sm:$0xff]
    %v848 = vld [vmem:[#allocation7 + $0x160] sm:$0xff]
    %v849 = vld [vmem:[#allocation7 + $0x168] sm:$0xff]
    %v850 = vld [vmem:[#allocation7 + $0x170] sm:$0xff]
    %v851 = vld [vmem:[#allocation7 + $0x178] sm:$0xff]
    %v852 = vld [vmem:[#allocation7 + $0x180] sm:$0xff]
    %v853 = vld [vmem:[#allocation7 + $0x188] sm:$0xff]
    %v854 = vld [vmem:[#allocation7 + $0x190] sm:$0xff]
    %v855 = vld [vmem:[#allocation7 + $0x198] sm:$0xff]
    %v856 = vld [vmem:[#allocation7 + $0x1a0] sm:$0xff]
    %v857 = vld [vmem:[#allocation7 + $0x1a8] sm:$0xff]
    %v858 = vld [vmem:[#allocation7 + $0x1b0] sm:$0xff]
    %v859 = vld [vmem:[#allocation7 + $0x1b8] sm:$0xff]
    %v860 = vld [vmem:[#allocation7 + $0x1c0] sm:$0xff]
    %v861 = vld [vmem:[#allocation7 + $0x1c8] sm:$0xff]
    %v862 = vld [vmem:[#allocation7 + $0x1d0] sm:$0xff]
    %v863 = vld [vmem:[#allocation7 + $0x1d8] sm:$0xff]
    %v864 = vld [vmem:[#allocation7 + $0x1e0] sm:$0xff]
    %v865 = vld [vmem:[#allocation7 + $0x1e8] sm:$0xff]
    %v866 = vld [vmem:[#allocation7 + $0x1f0] sm:$0xff]
    %v867 = vld [vmem:[#allocation7 + $0x1f8] sm:$0xff]
    %v869 = vlaneseq
    %v870 = vshrl.u32 %v869, 7
    %v871 = vsub.s32 0, %v870
    %v872 = vrot.slane %v111, %v871
    %v873 = vlaneseq
    %v874 = vshrl.u32 %v873, 7
    %v875 = vsub.s32 1, %v874
    %v876 = vrot.slane %v111, %v875
    %v877 = vlaneseq
    %v878 = vshrl.u32 %v877, 7
    %v879 = vsub.s32 2, %v878
    %v880 = vrot.slane %v111, %v879
    %v881 = vlaneseq
    %v882 = vshrl.u32 %v881, 7
    %v883 = vsub.s32 3, %v882
    %v884 = vrot.slane %v111, %v883
    %889 = vmatprep.subr.mxu0 %v805
    %890 = vmatpush1.msra.mxu0 %v804
    %891 = vmatprep.subr.mxu0 %v809
    %892 = vmatpush1.msra.mxu0 %v808
    %893 = vmatprep.subr.mxu0 %v813
    %894 = vmatpush1.msra.mxu0 %v812
    %895 = vmatprep.subr.mxu0 %v817
    %896 = vmatpush1.msra.mxu0 %v816
    %897 = vmatprep.subr.mxu0 %v821
    %898 = vmatpush1.msra.mxu0 %v820
    %899 = vmatprep.subr.mxu0 %v825
    %900 = vmatpush1.msra.mxu0 %v824
    %901 = vmatprep.subr.mxu0 %v829
    %902 = vmatpush1.msra.mxu0 %v828
    %903 = vmatprep.subr.mxu0 %v833
    %904 = vmatpush1.msra.mxu0 %v832
    %905 = vmatprep.subr.mxu0 %v837
    %906 = vmatpush1.msra.mxu0 %v836
    %907 = vmatprep.subr.mxu0 %v841
    %908 = vmatpush1.msra.mxu0 %v840
    %909 = vmatprep.subr.mxu0 %v845
    %910 = vmatpush1.msra.mxu0 %v844
    %911 = vmatprep.subr.mxu0 %v849
    %912 = vmatpush1.msra.mxu0 %v848
    %913 = vmatprep.subr.mxu0 %v853
    %914 = vmatpush1.msra.mxu0 %v852
    %915 = vmatprep.subr.mxu0 %v857
    %916 = vmatpush1.msra.mxu0 %v856
    %917 = vmatprep.subr.mxu0 %v861
    %918 = vmatpush1.msra.mxu0 %v860
    %919 = vmatprep.subr.mxu0 %v865
    %920 = vmatpush1.msra.mxu0 %v864
    %921 = vmatprep.subr.mxu0 0.0
    %922 = vmatpush1.msra.mxu0 0.0
    %923 = vmatprep.subr.mxu0 0.0
    %924 = vmatpush1.msra.mxu0 0.0
    %925 = vmatprep.subr.mxu0 0.0
    %926 = vmatpush1.msra.mxu0 0.0
    %927 = vmatprep.subr.mxu0 0.0
    %928 = vmatpush1.msra.mxu0 0.0
    %929 = vmatprep.subr.mxu0 0.0
    %930 = vmatpush1.msra.mxu0 0.0
    %931 = vmatprep.subr.mxu0 0.0
    %932 = vmatpush1.msra.mxu0 0.0
    %933 = vmatprep.subr.mxu0 0.0
    %934 = vmatpush1.msra.mxu0 0.0
    %935 = vmatprep.subr.mxu0 0.0
    %936 = vmatpush1.msra.mxu0 0.0
    %937 = vmatprep.subr.mxu0 0.0
    %938 = vmatpush1.msra.mxu0 0.0
    %939 = vmatprep.subr.mxu0 0.0
    %940 = vmatpush1.msra.mxu0 0.0
    %941 = vmatprep.subr.mxu0 0.0
    %942 = vmatpush1.msra.mxu0 0.0
    %943 = vmatprep.subr.mxu0 0.0
    %944 = vmatpush1.msra.mxu0 0.0
    %945 = vmatprep.subr.mxu0 0.0
    %946 = vmatpush1.msra.mxu0 0.0
    %947 = vmatprep.subr.mxu0 0.0
    %948 = vmatpush1.msra.mxu0 0.0
    %949 = vmatprep.subr.mxu0 0.0
    %950 = vmatpush1.msra.mxu0 0.0
    %951 = vmatprep.subr.mxu0 0.0
    %952 = vmatpush1.msra.mxu0 0.0
    %953 = vmatprep.mubr.f32.mxu0 0.0
    %954 = vmatmul.mubr.f32.gmra.mrb[0].mxu0 %v803
    %v955 = vpop.f32.mrb[0].mxu0
    %v956 = vadd.f32 %v872, %v955
    %v957 = vpop.f32.mrb[0].mxu0
    %v958 = vadd.f32 %v876, %v957
    %959 = vdwg.mxu0
    %960 = vmatprep.subr.mxu0 %v807
    %961 = vmatpush1.msra.mxu0 %v806
    %962 = vmatprep.subr.mxu0 %v811
    %963 = vmatpush1.msra.mxu0 %v810
    %964 = vmatprep.subr.mxu0 %v815
    %965 = vmatpush1.msra.mxu0 %v814
    %966 = vmatprep.subr.mxu0 %v819
    %967 = vmatpush1.msra.mxu0 %v818
    %968 = vmatprep.subr.mxu0 %v823
    %969 = vmatpush1.msra.mxu0 %v822
    %970 = vmatprep.subr.mxu0 %v827
    %971 = vmatpush1.msra.mxu0 %v826
    %972 = vmatprep.subr.mxu0 %v831
    %973 = vmatpush1.msra.mxu0 %v830
    %974 = vmatprep.subr.mxu0 %v835
    %975 = vmatpush1.msra.mxu0 %v834
    %976 = vmatprep.subr.mxu0 %v839
    %977 = vmatpush1.msra.mxu0 %v838
    %978 = vmatprep.subr.mxu0 %v843
    %979 = vmatpush1.msra.mxu0 %v842
    %980 = vmatprep.subr.mxu0 %v847
    %981 = vmatpush1.msra.mxu0 %v846
    %982 = vmatprep.subr.mxu0 %v851
    %983 = vmatpush1.msra.mxu0 %v850
    %984 = vmatprep.subr.mxu0 %v855
    %985 = vmatpush1.msra.mxu0 %v854
    %986 = vmatprep.subr.mxu0 %v859
    %987 = vmatpush1.msra.mxu0 %v858
    %988 = vmatprep.subr.mxu0 %v863
    %989 = vmatpush1.msra.mxu0 %v862
    %990 = vmatprep.subr.mxu0 %v867
    %991 = vmatpush1.msra.mxu0 %v866
    %992 = vmatprep.subr.mxu0 0.0
    %993 = vmatpush1.msra.mxu0 0.0
    %994 = vmatprep.subr.mxu0 0.0
    %995 = vmatpush1.msra.mxu0 0.0
    %996 = vmatprep.subr.mxu0 0.0
    %997 = vmatpush1.msra.mxu0 0.0
    %998 = vmatprep.subr.mxu0 0.0
    %999 = vmatpush1.msra.mxu0 0.0
    %1000 = vmatprep.subr.mxu0 0.0
    %1001 = vmatpush1.msra.mxu0 0.0
    %1002 = vmatprep.subr.mxu0 0.0
    %1003 = vmatpush1.msra.mxu0 0.0
    %1004 = vmatprep.subr.mxu0 0.0
    %1005 = vmatpush1.msra.mxu0 0.0
    %1006 = vmatprep.subr.mxu0 0.0
    %1007 = vmatpush1.msra.mxu0 0.0
    %1008 = vmatprep.subr.mxu0 0.0
    %1009 = vmatpush1.msra.mxu0 0.0
    %1010 = vmatprep.subr.mxu0 0.0
    %1011 = vmatpush1.msra.mxu0 0.0
    %1012 = vmatprep.subr.mxu0 0.0
    %1013 = vmatpush1.msra.mxu0 0.0
    %1014 = vmatprep.subr.mxu0 0.0
    %1015 = vmatpush1.msra.mxu0 0.0
    %1016 = vmatprep.subr.mxu0 0.0
    %1017 = vmatpush1.msra.mxu0 0.0
    %1018 = vmatprep.subr.mxu0 0.0
    %1019 = vmatpush1.msra.mxu0 0.0
    %1020 = vmatprep.subr.mxu0 0.0
    %1021 = vmatpush1.msra.mxu0 0.0
    %1022 = vmatprep.subr.mxu0 0.0
    %1023 = vmatpush1.msra.mxu0 0.0
    %1024 = vmatprep.mubr.f32.mxu0 0.0
    %1025 = vmatmul.mubr.f32.gmra.mrb[0].mxu0 %v803
    %v1026 = vpop.f32.mrb[0].mxu0
    %v1027 = vadd.f32 %v880, %v1026
    %v1028 = vpop.f32.mrb[0].mxu0
    %v1029 = vadd.f32 %v884, %v1028
    %1030 = vdwg.mxu0
    %v1031 = vmax.f32 %v956, 0.0
    %v1032 = vmax.f32 %v958, 0.0
    %v1033 = vmax.f32 %v1027, 0.0
    %v1034 = vmax.f32 %v1029, 0.0
    %v1035 = vld [vmem:[#allocation8] sm:$0xff]
    %v1036 = vld [vmem:[#allocation8 + $0x8] sm:$0xff]
    %v1037 = vld [vmem:[#allocation8 + $0x10] sm:$0xff]
    %v1038 = vld [vmem:[#allocation8 + $0x18] sm:$0xff]
    %v1039 = vld [vmem:[#allocation8 + $0x20] sm:$0xff]
    %v1040 = vld [vmem:[#allocation8 + $0x28] sm:$0xff]
    %v1041 = vld [vmem:[#allocation8 + $0x30] sm:$0xff]
    %v1042 = vld [vmem:[#allocation8 + $0x38] sm:$0xff]
    %v1043 = vld [vmem:[#allocation8 + $0x40] sm:$0xff]
    %v1044 = vld [vmem:[#allocation8 + $0x48] sm:$0xff]
    %v1045 = vld [vmem:[#allocation8 + $0x50] sm:$0xff]
    %v1046 = vld [vmem:[#allocation8 + $0x58] sm:$0xff]
    %v1047 = vld [vmem:[#allocation8 + $0x60] sm:$0xff]
    %v1048 = vld [vmem:[#allocation8 + $0x68] sm:$0xff]
    %v1049 = vld [vmem:[#allocation8 + $0x70] sm:$0xff]
    %v1050 = vld [vmem:[#allocation8 + $0x78] sm:$0xff]
    %v1051 = vld [vmem:[#allocation8 + $0x80] sm:$0xff]
    %v1052 = vld [vmem:[#allocation8 + $0x88] sm:$0xff]
    %v1053 = vld [vmem:[#allocation8 + $0x90] sm:$0xff]
    %v1054 = vld [vmem:[#allocation8 + $0x98] sm:$0xff]
    %v1055 = vld [vmem:[#allocation8 + $0xa0] sm:$0xff]
    %v1056 = vld [vmem:[#allocation8 + $0xa8] sm:$0xff]
    %v1057 = vld [vmem:[#allocation8 + $0xb0] sm:$0xff]
    %v1058 = vld [vmem:[#allocation8 + $0xb8] sm:$0xff]
    %v1059 = vld [vmem:[#allocation8 + $0xc0] sm:$0xff]
    %v1060 = vld [vmem:[#allocation8 + $0xc8] sm:$0xff]
    %v1061 = vld [vmem:[#allocation8 + $0xd0] sm:$0xff]
    %v1062 = vld [vmem:[#allocation8 + $0xd8] sm:$0xff]
    %v1063 = vld [vmem:[#allocation8 + $0xe0] sm:$0xff]
    %v1064 = vld [vmem:[#allocation8 + $0xe8] sm:$0xff]
    %v1065 = vld [vmem:[#allocation8 + $0xf0] sm:$0xff]
    %v1066 = vld [vmem:[#allocation8 + $0xf8] sm:$0xff]
    %v1067 = vld [vmem:[#allocation8 + $0x100] sm:$0xff]
    %v1068 = vld [vmem:[#allocation8 + $0x108] sm:$0xff]
    %v1069 = vld [vmem:[#allocation8 + $0x110] sm:$0xff]
    %v1070 = vld [vmem:[#allocation8 + $0x118] sm:$0xff]
    %v1071 = vld [vmem:[#allocation8 + $0x120] sm:$0xff]
    %v1072 = vld [vmem:[#allocation8 + $0x128] sm:$0xff]
    %v1073 = vld [vmem:[#allocation8 + $0x130] sm:$0xff]
    %v1074 = vld [vmem:[#allocation8 + $0x138] sm:$0xff]
    %v1075 = vld [vmem:[#allocation8 + $0x140] sm:$0xff]
    %v1076 = vld [vmem:[#allocation8 + $0x148] sm:$0xff]
    %v1077 = vld [vmem:[#allocation8 + $0x150] sm:$0xff]
    %v1078 = vld [vmem:[#allocation8 + $0x158] sm:$0xff]
    %v1079 = vld [vmem:[#allocation8 + $0x160] sm:$0xff]
    %v1080 = vld [vmem:[#allocation8 + $0x168] sm:$0xff]
    %v1081 = vld [vmem:[#allocation8 + $0x170] sm:$0xff]
    %v1082 = vld [vmem:[#allocation8 + $0x178] sm:$0xff]
    %v1083 = vld [vmem:[#allocation8 + $0x180] sm:$0xff]
    %v1084 = vld [vmem:[#allocation8 + $0x188] sm:$0xff]
    %v1085 = vld [vmem:[#allocation8 + $0x190] sm:$0xff]
    %v1086 = vld [vmem:[#allocation8 + $0x198] sm:$0xff]
    %v1087 = vld [vmem:[#allocation8 + $0x1a0] sm:$0xff]
    %v1088 = vld [vmem:[#allocation8 + $0x1a8] sm:$0xff]
    %v1089 = vld [vmem:[#allocation8 + $0x1b0] sm:$0xff]
    %v1090 = vld [vmem:[#allocation8 + $0x1b8] sm:$0xff]
    %v1091 = vld [vmem:[#allocation8 + $0x1c0] sm:$0xff]
    %v1092 = vld [vmem:[#allocation8 + $0x1c8] sm:$0xff]
    %v1093 = vld [vmem:[#allocation8 + $0x1d0] sm:$0xff]
    %v1094 = vld [vmem:[#allocation8 + $0x1d8] sm:$0xff]
    %v1095 = vld [vmem:[#allocation8 + $0x1e0] sm:$0xff]
    %v1096 = vld [vmem:[#allocation8 + $0x1e8] sm:$0xff]
    %v1097 = vld [vmem:[#allocation8 + $0x1f0] sm:$0xff]
    %v1098 = vld [vmem:[#allocation8 + $0x1f8] sm:$0xff]
    %v1099 = vlaneseq
    %v1100 = vshrl.u32 %v1099, 7
    %v1101 = vsub.s32 4, %v1100
    %v1102 = vrot.slane %v110, %v1101
    %1103 = vmatprep.subr.mxu0 0.0
    %1104 = vmatpush1.msra.mxu0 %v1035
    %1105 = vmatprep.subr.mxu0 0.0
    %1106 = vmatpush1.msra.mxu0 %v1036
    %1107 = vmatprep.subr.mxu0 0.0
    %1108 = vmatpush1.msra.mxu0 %v1037
    %1109 = vmatprep.subr.mxu0 0.0
    %1110 = vmatpush1.msra.mxu0 %v1038
    %1111 = vmatprep.subr.mxu0 0.0
    %1112 = vmatpush1.msra.mxu0 %v1039
    %1113 = vmatprep.subr.mxu0 0.0
    %1114 = vmatpush1.msra.mxu0 %v1040
    %1115 = vmatprep.subr.mxu0 0.0
    %1116 = vmatpush1.msra.mxu0 %v1041
    %1117 = vmatprep.subr.mxu0 0.0
    %1118 = vmatpush1.msra.mxu0 %v1042
    %1119 = vmatprep.subr.mxu0 0.0
    %1120 = vmatpush1.msra.mxu0 %v1043
    %1121 = vmatprep.subr.mxu0 0.0
    %1122 = vmatpush1.msra.mxu0 %v1044
    %1123 = vmatprep.subr.mxu0 0.0
    %1124 = vmatpush1.msra.mxu0 %v1045
    %1125 = vmatprep.subr.mxu0 0.0
    %1126 = vmatpush1.msra.mxu0 %v1046
    %1127 = vmatprep.subr.mxu0 0.0
    %1128 = vmatpush1.msra.mxu0 %v1047
    %1129 = vmatprep.subr.mxu0 0.0
    %1130 = vmatpush1.msra.mxu0 %v1048
    %1131 = vmatprep.subr.mxu0 0.0
    %1132 = vmatpush1.msra.mxu0 %v1049
    %1133 = vmatprep.subr.mxu0 0.0
    %1134 = vmatpush1.msra.mxu0 %v1050
    %1135 = vmatprep.subr.mxu0 0.0
    %1136 = vmatpush1.msra.mxu0 %v1051
    %1137 = vmatprep.subr.mxu0 0.0
    %1138 = vmatpush1.msra.mxu0 %v1052
    %1139 = vmatprep.subr.mxu0 0.0
    %1140 = vmatpush1.msra.mxu0 %v1053
    %1141 = vmatprep.subr.mxu0 0.0
    %1142 = vmatpush1.msra.mxu0 %v1054
    %1143 = vmatprep.subr.mxu0 0.0
    %1144 = vmatpush1.msra.mxu0 %v1055
    %1145 = vmatprep.subr.mxu0 0.0
    %1146 = vmatpush1.msra.mxu0 %v1056
    %1147 = vmatprep.subr.mxu0 0.0
    %1148 = vmatpush1.msra.mxu0 %v1057
    %1149 = vmatprep.subr.mxu0 0.0
    %1150 = vmatpush1.msra.mxu0 %v1058
    %1151 = vmatprep.subr.mxu0 0.0
    %1152 = vmatpush1.msra.mxu0 %v1059
    %1153 = vmatprep.subr.mxu0 0.0
    %1154 = vmatpush1.msra.mxu0 %v1060
    %1155 = vmatprep.subr.mxu0 0.0
    %1156 = vmatpush1.msra.mxu0 %v1061
    %1157 = vmatprep.subr.mxu0 0.0
    %1158 = vmatpush1.msra.mxu0 %v1062
    %1159 = vmatprep.subr.mxu0 0.0
    %1160 = vmatpush1.msra.mxu0 %v1063
    %1161 = vmatprep.subr.mxu0 0.0
    %1162 = vmatpush1.msra.mxu0 %v1064
    %1163 = vmatprep.subr.mxu0 0.0
    %1164 = vmatpush1.msra.mxu0 %v1065
    %1165 = vmatprep.subr.mxu0 0.0
    %1166 = vmatpush1.msra.mxu0 %v1066
    %1167 = vmatprep.mubr.f32.mxu0 %v1032
    %1168 = vmatmul.mubr.f32.gmra.mrb[0].mxu0 %v1031
    %v1169 = vpop.f32.mrb[0].mxu0
    %v1170 = vadd.f32 %v1102, %v1169
    %v1171 = vpop.f32.mrb[0].mxu0
    %1172 = vdwg.mxu0
    %1173 = vmatprep.subr.mxu0 0.0
    %1174 = vmatpush1.msra.mxu0 %v1067
    %1175 = vmatprep.subr.mxu0 0.0
    %1176 = vmatpush1.msra.mxu0 %v1068
    %1177 = vmatprep.subr.mxu0 0.0
    %1178 = vmatpush1.msra.mxu0 %v1069
    %1179 = vmatprep.subr.mxu0 0.0
    %1180 = vmatpush1.msra.mxu0 %v1070
    %1181 = vmatprep.subr.mxu0 0.0
    %1182 = vmatpush1.msra.mxu0 %v1071
    %1183 = vmatprep.subr.mxu0 0.0
    %1184 = vmatpush1.msra.mxu0 %v1072
    %1185 = vmatprep.subr.mxu0 0.0
    %1186 = vmatpush1.msra.mxu0 %v1073
    %1187 = vmatprep.subr.mxu0 0.0
    %1188 = vmatpush1.msra.mxu0 %v1074
    %1189 = vmatprep.subr.mxu0 0.0
    %1190 = vmatpush1.msra.mxu0 %v1075
    %1191 = vmatprep.subr.mxu0 0.0
    %1192 = vmatpush1.msra.mxu0 %v1076
    %1193 = vmatprep.subr.mxu0 0.0
    %1194 = vmatpush1.msra.mxu0 %v1077
    %1195 = vmatprep.subr.mxu0 0.0
    %1196 = vmatpush1.msra.mxu0 %v1078
    %1197 = vmatprep.subr.mxu0 0.0
    %1198 = vmatpush1.msra.mxu0 %v1079
    %1199 = vmatprep.subr.mxu0 0.0
    %1200 = vmatpush1.msra.mxu0 %v1080
    %1201 = vmatprep.subr.mxu0 0.0
    %1202 = vmatpush1.msra.mxu0 %v1081
    %1203 = vmatprep.subr.mxu0 0.0
    %1204 = vmatpush1.msra.mxu0 %v1082
    %1205 = vmatprep.subr.mxu0 0.0
    %1206 = vmatpush1.msra.mxu0 %v1083
    %1207 = vmatprep.subr.mxu0 0.0
    %1208 = vmatpush1.msra.mxu0 %v1084
    %1209 = vmatprep.subr.mxu0 0.0
    %1210 = vmatpush1.msra.mxu0 %v1085
    %1211 = vmatprep.subr.mxu0 0.0
    %1212 = vmatpush1.msra.mxu0 %v1086
    %1213 = vmatprep.subr.mxu0 0.0
    %1214 = vmatpush1.msra.mxu0 %v1087
    %1215 = vmatprep.subr.mxu0 0.0
    %1216 = vmatpush1.msra.mxu0 %v1088
    %1217 = vmatprep.subr.mxu0 0.0
    %1218 = vmatpush1.msra.mxu0 %v1089
    %1219 = vmatprep.subr.mxu0 0.0
    %1220 = vmatpush1.msra.mxu0 %v1090
    %1221 = vmatprep.subr.mxu0 0.0
    %1222 = vmatpush1.msra.mxu0 %v1091
    %1223 = vmatprep.subr.mxu0 0.0
    %1224 = vmatpush1.msra.mxu0 %v1092
    %1225 = vmatprep.subr.mxu0 0.0
    %1226 = vmatpush1.msra.mxu0 %v1093
    %1227 = vmatprep.subr.mxu0 0.0
    %1228 = vmatpush1.msra.mxu0 %v1094
    %1229 = vmatprep.subr.mxu0 0.0
    %1230 = vmatpush1.msra.mxu0 %v1095
    %1231 = vmatprep.subr.mxu0 0.0
    %1232 = vmatpush1.msra.mxu0 %v1096
    %1233 = vmatprep.subr.mxu0 0.0
    %1234 = vmatpush1.msra.mxu0 %v1097
    %1235 = vmatprep.subr.mxu0 0.0
    %1236 = vmatpush1.msra.mxu0 %v1098
    %1237 = vmatprep.mubr.f32.mxu0 %v1034
    %1238 = vmatmul.mubr.f32.gmra.mrb[0].mxu0 %v1033
    %v1239 = vpop.f32.mrb[0].mxu0
    %v1240 = vadd.f32 %v1170, %v1239
    %v1241 = vpop.f32.mrb[0].mxu0
    %1242 = vdwg.mxu0
    %v1243 = vadd.f32 %v649, %v1240
    %1244 = vst [vmem:[#allocation11] sm:$0x3] %v1243
    // Predicated region
    $region50: #{tpu_custom_call.1} parent=1 // pred_check
      _
    $region51: #{tpu_custom_call.1} parent=1 // pred_check_branch
      %1246 = sbr.rel (0) target = $region53
    $region52: #{tpu_custom_call.1} parent=1 // pred_region
      %s1248 = ssub.s32 32, 32
      %1249 = vsyncadd [#allocation4], %s1248
      %s1251 = sshll.u32 [#allocation11], 4
      %s1252 = int_to_ptr.vmem [resolvable:$true] %s1251
      %1254 = dma.vmem_to_hbm [thread:$0]  %s1252, 32, %s7, [#allocation4]
    $region53: #{tpu_custom_call.1} parent=1 // pred_fallthru
      _
    // Predicated region
    $region54: #{tpu_custom_call.1} parent=1 // pred_check
      _
    $region55: #{tpu_custom_call.1} parent=1 // pred_check_branch
      %1256 = sbr.rel (0) target = $region57
    $region56: #{tpu_custom_call.1} parent=1 // pred_region
      %1257 = dma.done [#allocation4], 32
    $region57: #{tpu_custom_call.1} parent=1 // pred_fallthru
      _
    %1258 = vsyncpa [#allocation3], 1
    %1259 = vsyncpa [#allocation6], 1
    %1260 = vsyncpa [#allocation9], 1
    %1261 = vsyncpa [#allocation4], 1

</llo_original>
